<compile_context>
chip_gen: v6e
topology: v6e:2x2x1
jax: 0.10.0
libtpu: 0.0.40
codegen_flags: <defaults>
</compile_context>

<pallas_src>
import functools

import jax
import jax.numpy as jnp
from jax import lax
from jax.experimental import pallas as pl
from jax.experimental.pallas import tpu as pltpu


# ------------------------------ helpers --------------------------------------

def _stack_taps(x, offs, length, pad_rows=0):
    """Concat fs*fs shifted lane-slices of x along the sublane (K) axis."""
    parts = [x[:, o:o + length] for o in offs]
    if pad_rows:
        parts.append(jnp.zeros((pad_rows, length), x.dtype))
    return jnp.concatenate(parts, axis=0)


def _pick_vmem_limit():
    """Generation-dependent scoped-VMEM limit (~96 MiB v5e/v6e, ~48 MiB v7x)."""
    try:
        cap = pltpu.get_tpu_info().vmem_capacity_bytes
    except Exception:
        cap = 64 * 1024 * 1024
    return int(min(cap * 3 // 4, 100 * 1024 * 1024))


# ------------------------------ fused kernel ----------------------------------

def _fused_de_dy_kernel(y_ref, fx_ref, m_ref,
                        w1s_ref, b1_ref, w2s_ref, b2_ref, w2ts_ref, w1ts_ref,
                        o_ref, *, wp, fs, entropy_decay):
    """Whole dE/dy chain for one image, on flattened zero-padded pixels.

    Layout: activations are (channels [sublanes], pixels [lanes]).  The padded
    image (Hp, Wp) is flattened (and lane-padded to a multiple of 128); the y
    input additionally carries 4*S zero guard pixels on each side so every
    conv stage can read its fs*fs shifted lane-slices in-bounds.  After every
    nonlinear stage the array is multiplied by the in-image mask, which
    reproduces 'same' zero padding for the next conv exactly.
    """
    hc = fs // 2
    nt = fs * fs
    S = hc * (wp + 1)                         # per-stage extent shrink (>= max shift)
    L0 = y_ref.shape[-1]                      # Pe_r + 8*S
    L1, L2, L3, L4 = L0 - 2 * S, L0 - 4 * S, L0 - 6 * S, L0 - 8 * S

    yg = y_ref[0]                             # (1, L0)  padded + guarded y (f32)
    mask = m_ref[0]                           # (1, L0)  1.0 inside the true image

    # flat-pixel offsets of the fs*fs conv taps, biased by +S (window start)
    offs = [S + (i - hc) * wp + (j - hc) for i in range(fs) for j in range(fs)]

    # ---- stage 1: h1 = conv1(y) + b1   (1 -> 32 ch) as one MXU dot, K=16
    kp1 = w1s_ref.shape[-1]
    ystk = _stack_taps(yg, offs, L1, pad_rows=kp1 - nt).astype(jnp.bfloat16)
    h1 = jnp.dot(w1s_ref[...], ystk,
                 preferred_element_type=jnp.float32) + b1_ref[...]
    # softplus(h1) and sigmoid(h1) share one exp; recip goes to the EUP
    e1 = jnp.exp(-jnp.abs(h1))
    r1 = pl.reciprocal(1.0 + e1, approx=True)
    a1 = (jnp.maximum(h1, 0.0) + jnp.log(1.0 + e1)) * mask[:, S:S + L1]
    s1 = jnp.where(h1 >= 0.0, r1, e1 * r1)

    # ---- stage 2: h2 = conv2(a1) + b2  (32 -> 32) as one (32,288)@(288,L2) dot
    a1b = a1.astype(jnp.bfloat16)
    a1stk = _stack_taps(a1b, offs, L2)
    h2 = jnp.dot(w2s_ref[...], a1stk,
                 preferred_element_type=jnp.float32) + b2_ref[...]
    # dE/dh2 = sigmoid(h2) * w3   (w3 of the 1x1 conv3 is folded into w2ts)
    e2 = jnp.exp(-jnp.abs(h2))
    r2 = pl.reciprocal(1.0 + e2, approx=True)
    g2 = jnp.where(h2 >= 0.0, r2, e2 * r2) * mask[:, 2 * S:2 * S + L2]

    # ---- stage 3: dE/dh1 = convT(dE/dh2, w3*f2) * sigmoid(h1)
    g2b = g2.astype(jnp.bfloat16)
    g2stk = _stack_taps(g2b, offs, L3)
    t1 = jnp.dot(w2ts_ref[...], g2stk, preferred_element_type=jnp.float32)
    g1 = (t1 * s1[:, 2 * S:2 * S + L3] * mask[:, 3 * S:3 * S + L3]
          ).astype(jnp.bfloat16)

    # ---- stage 4: 2*softplus(sigma_2)*dE_global/dy = convT(dE/dh1, coef*f1)
    #      (8,288)@(288,L4) dot on the MXU; only row 0 of w1ts is non-zero.
    g1stk = _stack_taps(g1, offs, L4)
    dy = jnp.dot(w1ts_ref[...], g1stk,
                 preferred_element_type=jnp.float32)[0:1]     # (1, L4)

    # ---- fused epilogue: dE/dy combine (lane-dense store, Pe_r % 128 == 0)
    y_img = yg[:, 4 * S:4 * S + L4]                           # padded-image extent
    fx = fx_ref[0]
    d_local = 2.0 * (y_img - fx)
    d_ent = jnp.log(1.0 - y_img + 1e-16) - jnp.log(y_img + 1e-16)
    o_ref[0] = d_local - dy + entropy_decay * d_ent


def _fused_de_dy_call(yg, fxp, mask, w1s, b1, w2s, b2, w2ts, w1ts, *, wp, fs,
                      entropy_decay):
    N, _, L0 = yg.shape
    pe_r = fxp.shape[-1]
    nt = fs * fs
    kp1 = w1s.shape[-1]
    kernel = functools.partial(_fused_de_dy_kernel, wp=wp, fs=fs,
                               entropy_decay=float(entropy_decay))
    cost = pl.CostEstimate(
        flops=int(2 * N * pe_r * nt * 32 * (2 * 32 + 2)),
        transcendentals=int(N * pe_r * (32 * 4 + 2)),
        bytes_accessed=int(3 * N * pe_r * 4),
    )
    return pl.pallas_call(
        kernel,
        out_shape=jax.ShapeDtypeStruct((N, 1, pe_r), jnp.float32),
        grid_spec=pltpu.PrefetchScalarGridSpec(
            num_scalar_prefetch=0,
            grid=(N,),
            in_specs=[
                pl.BlockSpec((1, 1, L0), lambda n: (n, 0, 0)),      # y (pad+guard)
                pl.BlockSpec((1, 1, pe_r), lambda n: (n, 0, 0)),    # F_x (padded)
                pl.BlockSpec((1, 1, L0), lambda n: (0, 0, 0)),      # in-image mask
                pl.BlockSpec((32, kp1), lambda n: (0, 0)),          # w1 stacked
                pl.BlockSpec((32, 1), lambda n: (0, 0)),            # b1
                pl.BlockSpec((32, nt * 32), lambda n: (0, 0)),      # w2 stacked
                pl.BlockSpec((32, 1), lambda n: (0, 0)),            # b2
                pl.BlockSpec((32, nt * 32), lambda n: (0, 0)),      # w2^T stacked
                pl.BlockSpec((8, nt * 32), lambda n: (0, 0)),       # w1^T stacked
            ],
            out_specs=pl.BlockSpec((1, 1, pe_r), lambda n: (n, 0, 0)),
        ),
        compiler_params=pltpu.CompilerParams(
            dimension_semantics=("parallel",),     # batch across cores (megacore)
            vmem_limit_bytes=_pick_vmem_limit(),
        ),
        cost_estimate=cost,
    )(yg, fxp, mask, w1s, b1, w2s, b2, w2ts, w1ts)


# ------------------------------ JAX wrapper -----------------------------------

@functools.partial(jax.jit, static_argnames=("fs", "entropy_decay"))
def _de_dy_forward(filter1, bias1, filter2, bias2, filter3, sigma_2,
                   F_x, y, *, fs, entropy_decay):
    N, _, H, W = y.shape
    hc = fs // 2
    nt = fs * fs
    Hp, Wp = H + 2 * hc, W + 2 * hc
    Pe = Hp * Wp
    Pe_r = ((Pe + 127) // 128) * 128        # lane-dense output extent
    S = hc * (Wp + 1)
    G = 4 * S                               # 4 chained convs each shrink by S
    Kp1 = ((nt + 15) // 16) * 16            # stage-1 K padded to bf16 packing

    # --- pack weights (tap-stacked along K, bf16 matmul operands) ---
    w1s = (jnp.zeros((32, Kp1), jnp.float32)
           .at[:, :nt].set(filter1[:, 0].reshape(32, nt))).astype(jnp.bfloat16)
    b1 = bias1.reshape(32, 1).astype(jnp.float32)
    w2s = jnp.transpose(filter2, (0, 2, 3, 1)).reshape(32, nt * 32)      # [co, t*32+ci]
    w2s = w2s.astype(jnp.bfloat16)
    b2 = bias2.reshape(32, 1).astype(jnp.float32)
    w3 = filter3[0, :, 0, 0]                                             # (32,)
    f2flip = filter2[:, :, ::-1, ::-1] * w3[:, None, None, None]         # fold w3
    w2ts = jnp.transpose(f2flip, (1, 2, 3, 0)).reshape(32, nt * 32)      # [ci, t*32+co]
    w2ts = w2ts.astype(jnp.bfloat16)
    coef = 2.0 * jax.nn.softplus(sigma_2[0])                             # fold coef
    f1flip = filter1[:, 0, ::-1, ::-1]
    w1t_row = (coef * jnp.transpose(f1flip, (1, 2, 0))).reshape(1, nt * 32)
    w1ts = (jnp.zeros((8, nt * 32), jnp.float32)
            .at[0:1].set(w1t_row)).astype(jnp.bfloat16)                  # M padded to 8

    # --- pack inputs: zero-pad spatially, flatten, lane-pad, add flat guards ---
    y2 = y.reshape(N, H, W)
    fx2 = F_x.reshape(N, H, W)
    ypad = jnp.pad(y2, ((0, 0), (hc, hc), (hc, hc))).reshape(N, Pe)
    ypad = jnp.pad(ypad, ((0, 0), (0, Pe_r - Pe)))
    yg = jnp.pad(ypad, ((0, 0), (G, G)))[:, None, :]                     # (N,1,Pe_r+2G)
    fxp = jnp.pad(fx2, ((0, 0), (hc, hc), (hc, hc))).reshape(N, Pe)
    fxp = jnp.pad(fxp, ((0, 0), (0, Pe_r - Pe)))[:, None, :]             # (N,1,Pe_r)
    m2 = jnp.zeros((Hp, Wp), jnp.float32).at[hc:hc + H, hc:hc + W].set(1.0)
    mask = jnp.pad(m2.reshape(Pe), (0, Pe_r - Pe))
    mask = jnp.pad(mask, (G, G)).reshape(1, 1, Pe_r + 2 * G)

    out = _fused_de_dy_call(yg, fxp, mask, w1s, b1, w2s, b2, w2ts, w1ts,
                            wp=Wp, fs=fs, entropy_decay=entropy_decay)
    out = out.reshape(N, Pe_r)[:, :Pe].reshape(N, Hp, Wp)[:, hc:hc + H, hc:hc + W]
    return out.reshape(N, 1, H, W)


def xavier_uniform(key, shape):
    cout, cin, kh, kw = shape
    fan_in, fan_out = cin * kh * kw, cout * kh * kw
    bound = (6.0 / (fan_in + fan_out)) ** 0.5
    return jax.random.uniform(key, shape, jnp.float32, -bound, bound)


class DerivativeEWrtY:
    """JAX/Pallas port of DerivativeE_wrt_y (forward only)."""

    def __init__(self, hyper, key):
        self.hyper = hyper
        fs = hyper['filter_size']
        assert fs % 2 == 1, "filter_size must be odd ('same' padding)"
        k1, k2, k3 = jax.random.split(key, 3)
        self.filter1 = xavier_uniform(k1, (32, 1, fs, fs))
        self.bias1 = jnp.zeros((32,), jnp.float32)
        self.filter2 = xavier_uniform(k2, (32, 32, fs, fs))
        self.bias2 = jnp.zeros((32,), jnp.float32)
        self.filter3 = xavier_uniform(k3, (1, 32, 1, 1))
        self.bias3 = jnp.zeros((1,), jnp.float32)
        self.sigma_2 = jnp.array([25.0], jnp.float32)

    def __call__(self, F_x, y):
        return _de_dy_forward(self.filter1, self.bias1, self.filter2,
                              self.bias2, self.filter3, self.sigma_2,
                              F_x, y, fs=self.hyper['filter_size'],
                              entropy_decay=float(self.hyper['entropy_decay']))


# --------------------------- pure-JAX reference -------------------------------

def reference_de_dy(mod, hyper, F_x, y):
    def conv(x, f, b):
        return lax.conv_general_dilated(
            x, jnp.transpose(f, (2, 3, 1, 0)), (1, 1), 'SAME',
            dimension_numbers=('NHWC', 'HWIO', 'NHWC'),
            precision=lax.Precision.HIGHEST) + b

    def e_global(y_nhwc):
        a1 = jax.nn.softplus(conv(y_nhwc, mod.filter1, mod.bias1))
        a2 = jax.nn.softplus(conv(a1, mod.filter2, mod.bias2))
        return jnp.sum(conv(a2, mod.filter3, mod.bias3))

    y_nhwc = jnp.transpose(y, (0, 2, 3, 1))
    dg = jnp.transpose(jax.grad(e_global)(y_nhwc), (0, 3, 1, 2))
    d_local = 2.0 * (y - F_x)
    d_ent = jnp.log(1.0 - y + 1e-16) - jnp.log(y + 1e-16)
    return (d_local - 2.0 * jax.nn.softplus(mod.sigma_2[0]) * dg
            + hyper['entropy_decay'] * d_ent)


# ---------------------------------- main ---------------------------------------

if __name__ == "__main__":
    hyper = {'filter_size': 3, 'entropy_decay': 0.3}
    N, C, H, W = 2, 1, 16, 16

    key = jax.random.PRNGKey(0)
    k_params, k_y, k_fx = jax.random.split(key, 3)

    module = DerivativeEWrtY(hyper, k_params)

    # y and F_x in (0, 1), PyTorch NCHW layout
    y = jax.nn.sigmoid(jax.random.normal(k_y, (N, C, H, W), jnp.float32))
    F_x = jax.nn.sigmoid(jax.random.normal(k_fx, (N, C, H, W), jnp.float32))

    out = jax.block_until_ready(module(F_x, y))

    ref = jax.block_until_ready(reference_de_dy(module, hyper, F_x, y))
    max_err = float(jnp.max(jnp.abs(out - ref)))
    scale = 1.0 + float(jnp.max(jnp.abs(ref)))
    assert out.shape == (N, C, H, W)
    assert max_err < 5e-2 * scale, f"mismatch vs reference: {max_err}"

    print("KERNEL_OK")
</pallas_src>

<mosaic_0001>
module attributes {stable_mosaic.version = 11 : i64} {
  func.func @_fused_de_dy_kernel(%arg0: i32, %arg1: memref<1x1x536xf32, #tpu.memory_space<vmem>>, %arg2: memref<1x1x384xf32, #tpu.memory_space<vmem>>, %arg3: memref<1x1x536xf32, #tpu.memory_space<vmem>>, %arg4: memref<32x16xbf16, #tpu.memory_space<vmem>>, %arg5: memref<32x1xf32, #tpu.memory_space<vmem>>, %arg6: memref<32x288xbf16, #tpu.memory_space<vmem>>, %arg7: memref<32x1xf32, #tpu.memory_space<vmem>>, %arg8: memref<32x288xbf16, #tpu.memory_space<vmem>>, %arg9: memref<8x288xbf16, #tpu.memory_space<vmem>>, %arg10: memref<1x1x384xf32, #tpu.memory_space<vmem>>) attributes {dimension_semantics = [#tpu.dimension_semantics<parallel>], iteration_bounds = array<i64: 2>, scalar_prefetch = 0 : i64, scratch_operands = 0 : i64, tpu.core_type = #tpu.core_type<tc>, window_params = [{transform_indices = @transform_0, window_bounds = array<i64: 1, 1, 536>}, {transform_indices = @transform_1, window_bounds = array<i64: 1, 1, 384>}, {pipeline_mode = #tpu.pipeline_mode<synchronous>, transform_indices = @transform_2, window_bounds = array<i64: 1, 1, 536>}, {pipeline_mode = #tpu.pipeline_mode<synchronous>, transform_indices = @transform_3, window_bounds = array<i64: 32, 16>}, {pipeline_mode = #tpu.pipeline_mode<synchronous>, transform_indices = @transform_4, window_bounds = array<i64: 32, 1>}, {pipeline_mode = #tpu.pipeline_mode<synchronous>, transform_indices = @transform_5, window_bounds = array<i64: 32, 288>}, {pipeline_mode = #tpu.pipeline_mode<synchronous>, transform_indices = @transform_6, window_bounds = array<i64: 32, 1>}, {pipeline_mode = #tpu.pipeline_mode<synchronous>, transform_indices = @transform_7, window_bounds = array<i64: 32, 288>}, {pipeline_mode = #tpu.pipeline_mode<synchronous>, transform_indices = @transform_8, window_bounds = array<i64: 8, 288>}, {transform_indices = @transform_9, window_bounds = array<i64: 1, 1, 384>}]} {
    %c0 = arith.constant 0 : index
    %c0_0 = arith.constant 0 : index
    %c0_1 = arith.constant 0 : index
    %0 = vector.load %arg1[%c0, %c0_0, %c0_1] : memref<1x1x536xf32, #tpu.memory_space<vmem>>, vector<1x1x536xf32>
    %1 = vector.shape_cast %0 : vector<1x1x536xf32> to vector<1x536xf32>
    %c0_2 = arith.constant 0 : index
    %c0_3 = arith.constant 0 : index
    %c0_4 = arith.constant 0 : index
    %2 = vector.load %arg3[%c0_2, %c0_3, %c0_4] : memref<1x1x536xf32, #tpu.memory_space<vmem>>, vector<1x1x536xf32>
    %3 = vector.shape_cast %2 : vector<1x1x536xf32> to vector<1x536xf32>
    %4 = vector.extract_strided_slice %1 {offsets = [0, 0], sizes = [1, 498], strides = [1, 1]} : vector<1x536xf32> to vector<1x498xf32>
    %5 = vector.extract_strided_slice %1 {offsets = [0, 1], sizes = [1, 498], strides = [1, 1]} : vector<1x536xf32> to vector<1x498xf32>
    %6 = vector.extract_strided_slice %1 {offsets = [0, 2], sizes = [1, 498], strides = [1, 1]} : vector<1x536xf32> to vector<1x498xf32>
    %7 = vector.extract_strided_slice %1 {offsets = [0, 18], sizes = [1, 498], strides = [1, 1]} : vector<1x536xf32> to vector<1x498xf32>
    %8 = vector.extract_strided_slice %1 {offsets = [0, 19], sizes = [1, 498], strides = [1, 1]} : vector<1x536xf32> to vector<1x498xf32>
    %9 = vector.extract_strided_slice %1 {offsets = [0, 20], sizes = [1, 498], strides = [1, 1]} : vector<1x536xf32> to vector<1x498xf32>
    %10 = vector.extract_strided_slice %1 {offsets = [0, 36], sizes = [1, 498], strides = [1, 1]} : vector<1x536xf32> to vector<1x498xf32>
    %11 = vector.extract_strided_slice %1 {offsets = [0, 37], sizes = [1, 498], strides = [1, 1]} : vector<1x536xf32> to vector<1x498xf32>
    %12 = vector.extract_strided_slice %1 {offsets = [0, 38], sizes = [1, 498], strides = [1, 1]} : vector<1x536xf32> to vector<1x498xf32>
    %cst = arith.constant 0.000000e+00 : f32
    %13 = vector.broadcast %cst : f32 to vector<7x498xf32>
    %14 = tpu.concatenate %4, %5, %6, %7, %8, %9, %10, %11, %12, %13 in 0 : vector<1x498xf32>, vector<1x498xf32>, vector<1x498xf32>, vector<1x498xf32>, vector<1x498xf32>, vector<1x498xf32>, vector<1x498xf32>, vector<1x498xf32>, vector<1x498xf32>, vector<7x498xf32> -> vector<16x498xf32>
    %15 = arith.truncf %14 : vector<16x498xf32> to vector<16x498xbf16>
    %c0_5 = arith.constant 0 : index
    %c0_6 = arith.constant 0 : index
    %16 = vector.load %arg4[%c0_5, %c0_6] : memref<32x16xbf16, #tpu.memory_space<vmem>>, vector<32x16xbf16>
    %cst_7 = arith.constant dense<0.000000e+00> : vector<32x498xf32>
    %17 = tpu.matmul %16, %15, %cst_7 {dimension_numbers = #tpu.dot_dimension_numbers<[1], [0], [0], [1], [0, 0, 1, 1], [], []>} : vector<32x16xbf16>, vector<16x498xbf16>, vector<32x498xf32> -> vector<32x498xf32>
    %c0_8 = arith.constant 0 : index
    %c0_9 = arith.constant 0 : index
    %18 = vector.load %arg5[%c0_8, %c0_9] : memref<32x1xf32, #tpu.memory_space<vmem>>, vector<32x1xf32>
    %19 = vector.broadcast %18 : vector<32x1xf32> to vector<32x498xf32>
    %20 = arith.addf %17, %19 : vector<32x498xf32>
    %21 = math.absf %20 : vector<32x498xf32>
    %cst_10 = arith.constant 0.000000e+00 : f32
    %22 = vector.broadcast %cst_10 : f32 to vector<32x498xf32>
    %23 = arith.subf %22, %21 : vector<32x498xf32>
    %24 = math.exp %23 : vector<32x498xf32>
    %cst_11 = arith.constant 1.000000e+00 : f32
    %25 = vector.broadcast %cst_11 : f32 to vector<32x498xf32>
    %26 = arith.addf %25, %24 : vector<32x498xf32>
    %27 = tpu.reciprocal %26 {approx = true} : vector<32x498xf32> -> vector<32x498xf32>
    %cst_12 = arith.constant 0.000000e+00 : f32
    %28 = vector.broadcast %cst_12 : f32 to vector<32x498xf32>
    %29 = arith.maximumf %20, %28 : vector<32x498xf32>
    %cst_13 = arith.constant 1.000000e+00 : f32
    %30 = vector.broadcast %cst_13 : f32 to vector<32x498xf32>
    %31 = arith.addf %30, %24 : vector<32x498xf32>
    %32 = math.log %31 : vector<32x498xf32>
    %33 = arith.addf %29, %32 : vector<32x498xf32>
    %34 = vector.extract_strided_slice %3 {offsets = [0, 19], sizes = [1, 498], strides = [1, 1]} : vector<1x536xf32> to vector<1x498xf32>
    %35 = vector.broadcast %34 : vector<1x498xf32> to vector<32x498xf32>
    %36 = arith.mulf %33, %35 : vector<32x498xf32>
    %cst_14 = arith.constant 0.000000e+00 : f32
    %37 = vector.broadcast %cst_14 : f32 to vector<32x498xf32>
    %38 = arith.cmpf oge, %20, %37 : vector<32x498xf32>
    %39 = arith.mulf %24, %27 : vector<32x498xf32>
    %40 = arith.select %38, %27, %39 : vector<32x498xi1>, vector<32x498xf32>
    %41 = arith.truncf %36 : vector<32x498xf32> to vector<32x498xbf16>
    %42 = vector.extract_strided_slice %41 {offsets = [0, 0], sizes = [32, 460], strides = [1, 1]} : vector<32x498xbf16> to vector<32x460xbf16>
    %43 = vector.extract_strided_slice %41 {offsets = [0, 1], sizes = [32, 460], strides = [1, 1]} : vector<32x498xbf16> to vector<32x460xbf16>
    %44 = vector.extract_strided_slice %41 {offsets = [0, 2], sizes = [32, 460], strides = [1, 1]} : vector<32x498xbf16> to vector<32x460xbf16>
    %45 = vector.extract_strided_slice %41 {offsets = [0, 18], sizes = [32, 460], strides = [1, 1]} : vector<32x498xbf16> to vector<32x460xbf16>
    %46 = vector.extract_strided_slice %41 {offsets = [0, 19], sizes = [32, 460], strides = [1, 1]} : vector<32x498xbf16> to vector<32x460xbf16>
    %47 = vector.extract_strided_slice %41 {offsets = [0, 20], sizes = [32, 460], strides = [1, 1]} : vector<32x498xbf16> to vector<32x460xbf16>
    %48 = vector.extract_strided_slice %41 {offsets = [0, 36], sizes = [32, 460], strides = [1, 1]} : vector<32x498xbf16> to vector<32x460xbf16>
    %49 = vector.extract_strided_slice %41 {offsets = [0, 37], sizes = [32, 460], strides = [1, 1]} : vector<32x498xbf16> to vector<32x460xbf16>
    %50 = vector.extract_strided_slice %41 {offsets = [0, 38], sizes = [32, 460], strides = [1, 1]} : vector<32x498xbf16> to vector<32x460xbf16>
    %51 = tpu.concatenate %42, %43, %44, %45, %46, %47, %48, %49, %50 in 0 : vector<32x460xbf16>, vector<32x460xbf16>, vector<32x460xbf16>, vector<32x460xbf16>, vector<32x460xbf16>, vector<32x460xbf16>, vector<32x460xbf16>, vector<32x460xbf16>, vector<32x460xbf16> -> vector<288x460xbf16>
    %c0_15 = arith.constant 0 : index
    %c0_16 = arith.constant 0 : index
    %52 = vector.load %arg6[%c0_15, %c0_16] : memref<32x288xbf16, #tpu.memory_space<vmem>>, vector<32x288xbf16>
    %cst_17 = arith.constant dense<0.000000e+00> : vector<32x460xf32>
    %53 = tpu.matmul %52, %51, %cst_17 {dimension_numbers = #tpu.dot_dimension_numbers<[1], [0], [0], [1], [0, 0, 1, 1], [], []>} : vector<32x288xbf16>, vector<288x460xbf16>, vector<32x460xf32> -> vector<32x460xf32>
    %c0_18 = arith.constant 0 : index
    %c0_19 = arith.constant 0 : index
    %54 = vector.load %arg7[%c0_18, %c0_19] : memref<32x1xf32, #tpu.memory_space<vmem>>, vector<32x1xf32>
    %55 = vector.broadcast %54 : vector<32x1xf32> to vector<32x460xf32>
    %56 = arith.addf %53, %55 : vector<32x460xf32>
    %57 = math.absf %56 : vector<32x460xf32>
    %cst_20 = arith.constant 0.000000e+00 : f32
    %58 = vector.broadcast %cst_20 : f32 to vector<32x460xf32>
    %59 = arith.subf %58, %57 : vector<32x460xf32>
    %60 = math.exp %59 : vector<32x460xf32>
    %cst_21 = arith.constant 1.000000e+00 : f32
    %61 = vector.broadcast %cst_21 : f32 to vector<32x460xf32>
    %62 = arith.addf %61, %60 : vector<32x460xf32>
    %63 = tpu.reciprocal %62 {approx = true} : vector<32x460xf32> -> vector<32x460xf32>
    %cst_22 = arith.constant 0.000000e+00 : f32
    %64 = vector.broadcast %cst_22 : f32 to vector<32x460xf32>
    %65 = arith.cmpf oge, %56, %64 : vector<32x460xf32>
    %66 = arith.mulf %60, %63 : vector<32x460xf32>
    %67 = arith.select %65, %63, %66 : vector<32x460xi1>, vector<32x460xf32>
    %68 = vector.extract_strided_slice %3 {offsets = [0, 38], sizes = [1, 460], strides = [1, 1]} : vector<1x536xf32> to vector<1x460xf32>
    %69 = vector.broadcast %68 : vector<1x460xf32> to vector<32x460xf32>
    %70 = arith.mulf %67, %69 : vector<32x460xf32>
    %71 = arith.truncf %70 : vector<32x460xf32> to vector<32x460xbf16>
    %72 = vector.extract_strided_slice %71 {offsets = [0, 0], sizes = [32, 422], strides = [1, 1]} : vector<32x460xbf16> to vector<32x422xbf16>
    %73 = vector.extract_strided_slice %71 {offsets = [0, 1], sizes = [32, 422], strides = [1, 1]} : vector<32x460xbf16> to vector<32x422xbf16>
    %74 = vector.extract_strided_slice %71 {offsets = [0, 2], sizes = [32, 422], strides = [1, 1]} : vector<32x460xbf16> to vector<32x422xbf16>
    %75 = vector.extract_strided_slice %71 {offsets = [0, 18], sizes = [32, 422], strides = [1, 1]} : vector<32x460xbf16> to vector<32x422xbf16>
    %76 = vector.extract_strided_slice %71 {offsets = [0, 19], sizes = [32, 422], strides = [1, 1]} : vector<32x460xbf16> to vector<32x422xbf16>
    %77 = vector.extract_strided_slice %71 {offsets = [0, 20], sizes = [32, 422], strides = [1, 1]} : vector<32x460xbf16> to vector<32x422xbf16>
    %78 = vector.extract_strided_slice %71 {offsets = [0, 36], sizes = [32, 422], strides = [1, 1]} : vector<32x460xbf16> to vector<32x422xbf16>
    %79 = vector.extract_strided_slice %71 {offsets = [0, 37], sizes = [32, 422], strides = [1, 1]} : vector<32x460xbf16> to vector<32x422xbf16>
    %80 = vector.extract_strided_slice %71 {offsets = [0, 38], sizes = [32, 422], strides = [1, 1]} : vector<32x460xbf16> to vector<32x422xbf16>
    %81 = tpu.concatenate %72, %73, %74, %75, %76, %77, %78, %79, %80 in 0 : vector<32x422xbf16>, vector<32x422xbf16>, vector<32x422xbf16>, vector<32x422xbf16>, vector<32x422xbf16>, vector<32x422xbf16>, vector<32x422xbf16>, vector<32x422xbf16>, vector<32x422xbf16> -> vector<288x422xbf16>
    %c0_23 = arith.constant 0 : index
    %c0_24 = arith.constant 0 : index
    %82 = vector.load %arg8[%c0_23, %c0_24] : memref<32x288xbf16, #tpu.memory_space<vmem>>, vector<32x288xbf16>
    %cst_25 = arith.constant dense<0.000000e+00> : vector<32x422xf32>
    %83 = tpu.matmul %82, %81, %cst_25 {dimension_numbers = #tpu.dot_dimension_numbers<[1], [0], [0], [1], [0, 0, 1, 1], [], []>} : vector<32x288xbf16>, vector<288x422xbf16>, vector<32x422xf32> -> vector<32x422xf32>
    %84 = vector.extract_strided_slice %40 {offsets = [0, 38], sizes = [32, 422], strides = [1, 1]} : vector<32x498xf32> to vector<32x422xf32>
    %85 = arith.mulf %83, %84 : vector<32x422xf32>
    %86 = vector.extract_strided_slice %3 {offsets = [0, 57], sizes = [1, 422], strides = [1, 1]} : vector<1x536xf32> to vector<1x422xf32>
    %87 = vector.broadcast %86 : vector<1x422xf32> to vector<32x422xf32>
    %88 = arith.mulf %85, %87 : vector<32x422xf32>
    %89 = arith.truncf %88 : vector<32x422xf32> to vector<32x422xbf16>
    %90 = vector.extract_strided_slice %89 {offsets = [0, 0], sizes = [32, 384], strides = [1, 1]} : vector<32x422xbf16> to vector<32x384xbf16>
    %91 = vector.extract_strided_slice %89 {offsets = [0, 1], sizes = [32, 384], strides = [1, 1]} : vector<32x422xbf16> to vector<32x384xbf16>
    %92 = vector.extract_strided_slice %89 {offsets = [0, 2], sizes = [32, 384], strides = [1, 1]} : vector<32x422xbf16> to vector<32x384xbf16>
    %93 = vector.extract_strided_slice %89 {offsets = [0, 18], sizes = [32, 384], strides = [1, 1]} : vector<32x422xbf16> to vector<32x384xbf16>
    %94 = vector.extract_strided_slice %89 {offsets = [0, 19], sizes = [32, 384], strides = [1, 1]} : vector<32x422xbf16> to vector<32x384xbf16>
    %95 = vector.extract_strided_slice %89 {offsets = [0, 20], sizes = [32, 384], strides = [1, 1]} : vector<32x422xbf16> to vector<32x384xbf16>
    %96 = vector.extract_strided_slice %89 {offsets = [0, 36], sizes = [32, 384], strides = [1, 1]} : vector<32x422xbf16> to vector<32x384xbf16>
    %97 = vector.extract_strided_slice %89 {offsets = [0, 37], sizes = [32, 384], strides = [1, 1]} : vector<32x422xbf16> to vector<32x384xbf16>
    %98 = vector.extract_strided_slice %89 {offsets = [0, 38], sizes = [32, 384], strides = [1, 1]} : vector<32x422xbf16> to vector<32x384xbf16>
    %99 = tpu.concatenate %90, %91, %92, %93, %94, %95, %96, %97, %98 in 0 : vector<32x384xbf16>, vector<32x384xbf16>, vector<32x384xbf16>, vector<32x384xbf16>, vector<32x384xbf16>, vector<32x384xbf16>, vector<32x384xbf16>, vector<32x384xbf16>, vector<32x384xbf16> -> vector<288x384xbf16>
    %c0_26 = arith.constant 0 : index
    %c0_27 = arith.constant 0 : index
    %100 = vector.load %arg9[%c0_26, %c0_27] : memref<8x288xbf16, #tpu.memory_space<vmem>>, vector<8x288xbf16>
    %cst_28 = arith.constant dense<0.000000e+00> : vector<8x384xf32>
    %101 = tpu.matmul %100, %99, %cst_28 {dimension_numbers = #tpu.dot_dimension_numbers<[1], [0], [0], [1], [0, 0, 1, 1], [], []>} : vector<8x288xbf16>, vector<288x384xbf16>, vector<8x384xf32> -> vector<8x384xf32>
    %102 = vector.extract_strided_slice %101 {offsets = [0, 0], sizes = [1, 384], strides = [1, 1]} : vector<8x384xf32> to vector<1x384xf32>
    %103 = vector.extract_strided_slice %1 {offsets = [0, 76], sizes = [1, 384], strides = [1, 1]} : vector<1x536xf32> to vector<1x384xf32>
    %c0_29 = arith.constant 0 : index
    %c0_30 = arith.constant 0 : index
    %c0_31 = arith.constant 0 : index
    %104 = vector.load %arg2[%c0_29, %c0_30, %c0_31] : memref<1x1x384xf32, #tpu.memory_space<vmem>>, vector<1x1x384xf32>
    %105 = vector.shape_cast %104 : vector<1x1x384xf32> to vector<1x384xf32>
    %106 = arith.subf %103, %105 : vector<1x384xf32>
    %cst_32 = arith.constant 2.000000e+00 : f32
    %107 = vector.broadcast %cst_32 : f32 to vector<1x384xf32>
    %108 = arith.mulf %107, %106 : vector<1x384xf32>
    %cst_33 = arith.constant 1.000000e+00 : f32
    %109 = vector.broadcast %cst_33 : f32 to vector<1x384xf32>
    %110 = arith.subf %109, %103 : vector<1x384xf32>
    %cst_34 = arith.constant 1.000000e-16 : f32
    %111 = vector.broadcast %cst_34 : f32 to vector<1x384xf32>
    %112 = arith.addf %110, %111 : vector<1x384xf32>
    %113 = math.log %112 : vector<1x384xf32>
    %cst_35 = arith.constant 1.000000e-16 : f32
    %114 = vector.broadcast %cst_35 : f32 to vector<1x384xf32>
    %115 = arith.addf %103, %114 : vector<1x384xf32>
    %116 = math.log %115 : vector<1x384xf32>
    %117 = arith.subf %113, %116 : vector<1x384xf32>
    %118 = arith.subf %108, %102 : vector<1x384xf32>
    %cst_36 = arith.constant 3.000000e-01 : f32
    %119 = vector.broadcast %cst_36 : f32 to vector<1x384xf32>
    %120 = arith.mulf %119, %117 : vector<1x384xf32>
    %121 = arith.addf %118, %120 : vector<1x384xf32>
    %c0_37 = arith.constant 0 : index
    %c0_38 = arith.constant 0 : index
    %c0_39 = arith.constant 0 : index
    %122 = vector.load %arg10[%c0_37, %c0_38, %c0_39] : memref<1x1x384xf32, #tpu.memory_space<vmem>>, vector<1x1x384xf32>
    %123 = vector.shape_cast %122 : vector<1x1x384xf32> to vector<1x384xf32>
    %124 = vector.shape_cast %121 : vector<1x384xf32> to vector<1x1x384xf32>
    tpu.vector_store %arg10[%c0_37, %c0_38, %c0_39], %124 {strides = array<i32>} : memref<1x1x384xf32, #tpu.memory_space<vmem>>, vector<1x1x384xf32>,
    return
  }
  func.func @transform_0(%arg0: i32) -> (i32, i32, i32) {
    %c0_i32 = arith.constant 0 : i32
    %c0_i32_0 = arith.constant 0 : i32
    %c0_i32_1 = arith.constant 0 : i32
    return %arg0, %c0_i32, %c0_i32_0 : i32, i32, i32
  }
  func.func @transform_1(%arg0: i32) -> (i32, i32, i32) {
    %c0_i32 = arith.constant 0 : i32
    %c0_i32_0 = arith.constant 0 : i32
    %c0_i32_1 = arith.constant 0 : i32
    return %arg0, %c0_i32, %c0_i32_0 : i32, i32, i32
  }
  func.func @transform_2(%arg0: i32) -> (i32, i32, i32) {
    %c0_i32 = arith.constant 0 : i32
    %c0_i32_0 = arith.constant 0 : i32
    %c0_i32_1 = arith.constant 0 : i32
    %c0_i32_2 = arith.constant 0 : i32
    return %c0_i32, %c0_i32_0, %c0_i32_1 : i32, i32, i32
  }
  func.func @transform_3(%arg0: i32) -> (i32, i32) {
    %c0_i32 = arith.constant 0 : i32
    %c0_i32_0 = arith.constant 0 : i32
    %c0_i32_1 = arith.constant 0 : i32
    return %c0_i32, %c0_i32_0 : i32, i32
  }
  func.func @transform_4(%arg0: i32) -> (i32, i32) {
    %c0_i32 = arith.constant 0 : i32
    %c0_i32_0 = arith.constant 0 : i32
    %c0_i32_1 = arith.constant 0 : i32
    return %c0_i32, %c0_i32_0 : i32, i32
  }
  func.func @transform_5(%arg0: i32) -> (i32, i32) {
    %c0_i32 = arith.constant 0 : i32
    %c0_i32_0 = arith.constant 0 : i32
    %c0_i32_1 = arith.constant 0 : i32
    return %c0_i32, %c0_i32_0 : i32, i32
  }
  func.func @transform_6(%arg0: i32) -> (i32, i32) {
    %c0_i32 = arith.constant 0 : i32
    %c0_i32_0 = arith.constant 0 : i32
    %c0_i32_1 = arith.constant 0 : i32
    return %c0_i32, %c0_i32_0 : i32, i32
  }
  func.func @transform_7(%arg0: i32) -> (i32, i32) {
    %c0_i32 = arith.constant 0 : i32
    %c0_i32_0 = arith.constant 0 : i32
    %c0_i32_1 = arith.constant 0 : i32
    return %c0_i32, %c0_i32_0 : i32, i32
  }
  func.func @transform_8(%arg0: i32) -> (i32, i32) {
    %c0_i32 = arith.constant 0 : i32
    %c0_i32_0 = arith.constant 0 : i32
    %c0_i32_1 = arith.constant 0 : i32
    return %c0_i32, %c0_i32_0 : i32, i32
  }
  func.func @transform_9(%arg0: i32) -> (i32, i32, i32) {
    %c0_i32 = arith.constant 0 : i32
    %c0_i32_0 = arith.constant 0 : i32
    %c0_i32_1 = arith.constant 0 : i32
    return %arg0, %c0_i32, %c0_i32_0 : i32, i32, i32
  }
}

</mosaic_0001>

<llo_original>
// kernel: _de_dy_forward.1
$region0: #{_de_dy_forward.1}
  #allocation0 [shape = 'u32[]', space=smem, size = 0x4, offset = 0x4, fixed_abs, tag = 'smem constant byte address 0x4 - core index']
  #allocation1 [shape = 'u32[144,128]{1,0:T(1,128)}', space=vmem, size = 0x12000, scoped, tag = 'internal scratch']
  %s0 = inlined_call_operand.vmem [shape: f32[2,1,536], index: 0, kind: input, shape index: {}]
  %s1 = inlined_call_operand.vmem [shape: f32[2,1,384], index: 1, kind: input, shape index: {}]
  %s2 = inlined_call_operand.vmem [shape: f32[1,1,536], index: 2, kind: input, shape index: {}]
  %s3 = inlined_call_operand.vmem [shape: bf16[32,16], index: 3, kind: input, shape index: {}]
  %s4 = inlined_call_operand.vmem [shape: f32[32,1], index: 4, kind: input, shape index: {}]
  %s5 = inlined_call_operand.vmem [shape: bf16[32,288], index: 5, kind: input, shape index: {}]
  %s6 = inlined_call_operand.vmem [shape: f32[32,1], index: 6, kind: input, shape index: {}]
  %s7 = inlined_call_operand.vmem [shape: bf16[32,288], index: 7, kind: input, shape index: {}]
  %s8 = inlined_call_operand.vmem [shape: bf16[8,288], index: 8, kind: input, shape index: {}]
  %s9 = inlined_call_operand.vmem [shape: f32[2,1,384], index: 9, kind: output, shape index: {}]
  %s10 = sld [smem:[#allocation0]]
  $region69: #{_de_dy_forward.1} parent=0
    _
  %s12 = ssub.s32 1, %s10
  %s13 = scalar_select 0, %s12, %s10
  loop: start=0, step=1, limit=4
  $region2: #{_de_dy_forward.1} parent=0 // loop_pre_header
    _
  $region3: #{_de_dy_forward.1} parent=0 // loop_header
    %s15 = sphi 0, %s19
    %p16 = scmp.ge.s32.totalorder %s15, 4
    %s25 = sphi 0, %s27
    %s28 = sphi 0, %s25
    %s29 = sphi 0, %s28
    %s45 = sphi 0, %s29
    %s51 = sphi 0, %s53
    %s54 = sphi 0, %s51
    %s55 = sphi 0, %s54
    %s71 = sphi 0, %s55
    %s75 = sphi 0, %s75
    %s77 = sphi 0, %s75
    %s78 = sphi 0, %s77
    %s92 = sphi 0, %s78
    %s96 = sphi 0, %s96
    %s98 = sphi 0, %s96
    %s99 = sphi 0, %s98
    %s113 = sphi 0, %s99
    %s117 = sphi 0, %s117
    %s119 = sphi 0, %s117
    %s120 = sphi 0, %s119
    %s134 = sphi 0, %s120
    %s138 = sphi 0, %s138
    %s140 = sphi 0, %s138
    %s141 = sphi 0, %s140
    %s155 = sphi 0, %s141
    %s159 = sphi 0, %s159
    %s161 = sphi 0, %s159
    %s162 = sphi 0, %s161
    %s176 = sphi 0, %s162
    %s180 = sphi 0, %s180
    %s182 = sphi 0, %s180
    %s183 = sphi 0, %s182
    %s197 = sphi 0, %s183
    %s201 = sphi 0, %s201
    %s203 = sphi 0, %s201
    %s204 = sphi 0, %s203
    %s218 = sphi 0, %s204
    %s224 = sphi 0, %s226
    %s227 = sphi 0, %s224
    %s228 = sphi 0, %s227
    %s244 = sphi 0, %s228
  $region4: #{_de_dy_forward.1} parent=0 // loop_header_branch
    %18 = sbr.rel (%p16) target = $region8
  $region5: #{_de_dy_forward.1} parent=0 // loop_body
    %s20 = ssub.s32 %s15, 1
    %s21 = ssub.s32 %s15, 2
    %s22 = sadd.s32 %s15, 1
    %s23 = ssub.s32 %s15, %s22
    %p24 = scmp.eq.s32.totalorder %s23, 0
    %s26 = sadd.s32 %s25, 1
    %s27 = scalar_select %p24, %s25, %s26
    %p30 = pneg %p24
    %p31 = scmp.eq.s32.totalorder %s15, 1
    %p32 = por %p30, %p31
    %p33 = scmp.ne.s32.totalorder %s25, %s28
    %p34 = scmp.eq.s32.totalorder %s15, 0
    %p35 = por %p33, %p34
    %p36 = scmp.ne.s32.totalorder %s25, %s28
    %p37 = scmp.eq.s32.totalorder %s20, 1
    %p38 = por %p36, %p37
    %p39 = scmp.ne.s32.totalorder %s28, %s29
    %p40 = scmp.eq.s32.totalorder %s20, 0
    %p41 = por %p39, %p40
    %p42 = scmp.ne.s32.totalorder %s28, %s29
    %p43 = scmp.eq.s32.totalorder %s21, 1
    %p44 = por %p42, %p43
    %p46 = scmp.ne.s32.totalorder %s29, %s45
    %p47 = scmp.eq.s32.totalorder %s21, 0
    %p48 = por %p46, %p47
    %s49 = ssub.s32 %s15, %s22
    %p50 = scmp.eq.s32.totalorder %s49, 0
    %s52 = sadd.s32 %s51, 1
    %s53 = scalar_select %p50, %s51, %s52
    %p56 = pneg %p50
    %p57 = scmp.eq.s32.totalorder %s15, 1
    %p58 = por %p56, %p57
    %p59 = scmp.ne.s32.totalorder %s51, %s54
    %p60 = scmp.eq.s32.totalorder %s15, 0
    %p61 = por %p59, %p60
    %p62 = scmp.ne.s32.totalorder %s51, %s54
    %p63 = scmp.eq.s32.totalorder %s20, 1
    %p64 = por %p62, %p63
    %p65 = scmp.ne.s32.totalorder %s54, %s55
    %p66 = scmp.eq.s32.totalorder %s20, 0
    %p67 = por %p65, %p66
    %p68 = scmp.ne.s32.totalorder %s54, %s55
    %p69 = scmp.eq.s32.totalorder %s21, 1
    %p70 = por %p68, %p69
    %p72 = scmp.ne.s32.totalorder %s55, %s71
    %p73 = scmp.eq.s32.totalorder %s21, 0
    %p74 = por %p72, %p73
    %s76 = sadd.s32 %s75, 1
    %p79 = scmp.eq.s32.totalorder %s15, 1
    %p80 = scmp.ne.s32.totalorder %s75, %s77
    %p81 = scmp.eq.s32.totalorder %s15, 0
    %p82 = por %p80, %p81
    %p83 = scmp.ne.s32.totalorder %s75, %s77
    %p84 = scmp.eq.s32.totalorder %s20, 1
    %p85 = por %p83, %p84
    %p86 = scmp.ne.s32.totalorder %s77, %s78
    %p87 = scmp.eq.s32.totalorder %s20, 0
    %p88 = por %p86, %p87
    %p89 = scmp.ne.s32.totalorder %s77, %s78
    %p90 = scmp.eq.s32.totalorder %s21, 1
    %p91 = por %p89, %p90
    %p93 = scmp.ne.s32.totalorder %s78, %s92
    %p94 = scmp.eq.s32.totalorder %s21, 0
    %p95 = por %p93, %p94
    %s97 = sadd.s32 %s96, 1
    %p100 = scmp.eq.s32.totalorder %s15, 1
    %p101 = scmp.ne.s32.totalorder %s96, %s98
    %p102 = scmp.eq.s32.totalorder %s15, 0
    %p103 = por %p101, %p102
    %p104 = scmp.ne.s32.totalorder %s96, %s98
    %p105 = scmp.eq.s32.totalorder %s20, 1
    %p106 = por %p104, %p105
    %p107 = scmp.ne.s32.totalorder %s98, %s99
    %p108 = scmp.eq.s32.totalorder %s20, 0
    %p109 = por %p107, %p108
    %p110 = scmp.ne.s32.totalorder %s98, %s99
    %p111 = scmp.eq.s32.totalorder %s21, 1
    %p112 = por %p110, %p111
    %p114 = scmp.ne.s32.totalorder %s99, %s113
    %p115 = scmp.eq.s32.totalorder %s21, 0
    %p116 = por %p114, %p115
    %s118 = sadd.s32 %s117, 1
    %p121 = scmp.eq.s32.totalorder %s15, 1
    %p122 = scmp.ne.s32.totalorder %s117, %s119
    %p123 = scmp.eq.s32.totalorder %s15, 0
    %p124 = por %p122, %p123
    %p125 = scmp.ne.s32.totalorder %s117, %s119
    %p126 = scmp.eq.s32.totalorder %s20, 1
    %p127 = por %p125, %p126
    %p128 = scmp.ne.s32.totalorder %s119, %s120
    %p129 = scmp.eq.s32.totalorder %s20, 0
    %p130 = por %p128, %p129
    %p131 = scmp.ne.s32.totalorder %s119, %s120
    %p132 = scmp.eq.s32.totalorder %s21, 1
    %p133 = por %p131, %p132
    %p135 = scmp.ne.s32.totalorder %s120, %s134
    %p136 = scmp.eq.s32.totalorder %s21, 0
    %p137 = por %p135, %p136
    %s139 = sadd.s32 %s138, 1
    %p142 = scmp.eq.s32.totalorder %s15, 1
    %p143 = scmp.ne.s32.totalorder %s138, %s140
    %p144 = scmp.eq.s32.totalorder %s15, 0
    %p145 = por %p143, %p144
    %p146 = scmp.ne.s32.totalorder %s138, %s140
    %p147 = scmp.eq.s32.totalorder %s20, 1
    %p148 = por %p146, %p147
    %p149 = scmp.ne.s32.totalorder %s140, %s141
    %p150 = scmp.eq.s32.totalorder %s20, 0
    %p151 = por %p149, %p150
    %p152 = scmp.ne.s32.totalorder %s140, %s141
    %p153 = scmp.eq.s32.totalorder %s21, 1
    %p154 = por %p152, %p153
    %p156 = scmp.ne.s32.totalorder %s141, %s155
    %p157 = scmp.eq.s32.totalorder %s21, 0
    %p158 = por %p156, %p157
    %s160 = sadd.s32 %s159, 1
    %p163 = scmp.eq.s32.totalorder %s15, 1
    %p164 = scmp.ne.s32.totalorder %s159, %s161
    %p165 = scmp.eq.s32.totalorder %s15, 0
    %p166 = por %p164, %p165
    %p167 = scmp.ne.s32.totalorder %s159, %s161
    %p168 = scmp.eq.s32.totalorder %s20, 1
    %p169 = por %p167, %p168
    %p170 = scmp.ne.s32.totalorder %s161, %s162
    %p171 = scmp.eq.s32.totalorder %s20, 0
    %p172 = por %p170, %p171
    %p173 = scmp.ne.s32.totalorder %s161, %s162
    %p174 = scmp.eq.s32.totalorder %s21, 1
    %p175 = por %p173, %p174
    %p177 = scmp.ne.s32.totalorder %s162, %s176
    %p178 = scmp.eq.s32.totalorder %s21, 0
    %p179 = por %p177, %p178
    %s181 = sadd.s32 %s180, 1
    %p184 = scmp.eq.s32.totalorder %s15, 1
    %p185 = scmp.ne.s32.totalorder %s180, %s182
    %p186 = scmp.eq.s32.totalorder %s15, 0
    %p187 = por %p185, %p186
    %p188 = scmp.ne.s32.totalorder %s180, %s182
    %p189 = scmp.eq.s32.totalorder %s20, 1
    %p190 = por %p188, %p189
    %p191 = scmp.ne.s32.totalorder %s182, %s183
    %p192 = scmp.eq.s32.totalorder %s20, 0
    %p193 = por %p191, %p192
    %p194 = scmp.ne.s32.totalorder %s182, %s183
    %p195 = scmp.eq.s32.totalorder %s21, 1
    %p196 = por %p194, %p195
    %p198 = scmp.ne.s32.totalorder %s183, %s197
    %p199 = scmp.eq.s32.totalorder %s21, 0
    %p200 = por %p198, %p199
    %s202 = sadd.s32 %s201, 1
    %p205 = scmp.eq.s32.totalorder %s15, 1
    %p206 = scmp.ne.s32.totalorder %s201, %s203
    %p207 = scmp.eq.s32.totalorder %s15, 0
    %p208 = por %p206, %p207
    %p209 = scmp.ne.s32.totalorder %s201, %s203
    %p210 = scmp.eq.s32.totalorder %s20, 1
    %p211 = por %p209, %p210
    %p212 = scmp.ne.s32.totalorder %s203, %s204
    %p213 = scmp.eq.s32.totalorder %s20, 0
    %p214 = por %p212, %p213
    %p215 = scmp.ne.s32.totalorder %s203, %s204
    %p216 = scmp.eq.s32.totalorder %s21, 1
    %p217 = por %p215, %p216
    %p219 = scmp.ne.s32.totalorder %s204, %s218
    %p220 = scmp.eq.s32.totalorder %s21, 0
    %p221 = por %p219, %p220
    %s222 = ssub.s32 %s15, %s22
    %p223 = scmp.eq.s32.totalorder %s222, 0
    %s225 = sadd.s32 %s224, 1
    %s226 = scalar_select %p223, %s224, %s225
    %p229 = pneg %p223
    %p230 = scmp.eq.s32.totalorder %s15, 1
    %p231 = por %p229, %p230
    %p232 = scmp.ne.s32.totalorder %s224, %s227
    %p233 = scmp.eq.s32.totalorder %s15, 0
    %p234 = por %p232, %p233
    %p235 = scmp.ne.s32.totalorder %s224, %s227
    %p236 = scmp.eq.s32.totalorder %s20, 1
    %p237 = por %p235, %p236
    %p238 = scmp.ne.s32.totalorder %s227, %s228
    %p239 = scmp.eq.s32.totalorder %s20, 0
    %p240 = por %p238, %p239
    %p241 = scmp.ne.s32.totalorder %s227, %s228
    %p242 = scmp.eq.s32.totalorder %s21, 1
    %p243 = por %p241, %p242
    %p245 = scmp.ne.s32.totalorder %s228, %s244
    %p246 = scmp.eq.s32.totalorder %s21, 0
    %p247 = por %p245, %p246
    %p248 = scmp.le.s32.totalorder 1, %s15
    %p249 = scmp.lt.s32.totalorder %s15, 3
    %p250 = pnand %p248, %p249
    %p251 = pneg %p250
    // Predicated region
    $region9: #{_de_dy_forward.1} parent=5 // pred_check
      _
    $region10: #{_de_dy_forward.1} parent=5 // pred_check_branch
      %253 = sbr.rel (%p250) target = $region12
    $region11: #{_de_dy_forward.1} parent=5 // pred_region
      %s254 = ssub.s32 %s15, 1
      // Predicated region
      $region13: #{_de_dy_forward.1} parent=11 // pred_check
        %p255 = pneg %p88
      $region14: #{_de_dy_forward.1} parent=11 // pred_check_branch
        %257 = sbr.rel (%p255) target = $region16
      $region15: #{_de_dy_forward.1} parent=11 // pred_region
        _
      $region16: #{_de_dy_forward.1} parent=11 // pred_fallthru
        _
      // Predicated region
      $region17: #{_de_dy_forward.1} parent=11 // pred_check
        %p258 = pneg %p109
      $region18: #{_de_dy_forward.1} parent=11 // pred_check_branch
        %260 = sbr.rel (%p258) target = $region20
      $region19: #{_de_dy_forward.1} parent=11 // pred_region
        _
      $region20: #{_de_dy_forward.1} parent=11 // pred_fallthru
        _
      // Predicated region
      $region21: #{_de_dy_forward.1} parent=11 // pred_check
        %p261 = pneg %p130
      $region22: #{_de_dy_forward.1} parent=11 // pred_check_branch
        %263 = sbr.rel (%p261) target = $region24
      $region23: #{_de_dy_forward.1} parent=11 // pred_region
        _
      $region24: #{_de_dy_forward.1} parent=11 // pred_fallthru
        _
      // Predicated region
      $region25: #{_de_dy_forward.1} parent=11 // pred_check
        %p264 = pneg %p151
      $region26: #{_de_dy_forward.1} parent=11 // pred_check_branch
        %266 = sbr.rel (%p264) target = $region28
      $region27: #{_de_dy_forward.1} parent=11 // pred_region
        _
      $region28: #{_de_dy_forward.1} parent=11 // pred_fallthru
        _
      // Predicated region
      $region29: #{_de_dy_forward.1} parent=11 // pred_check
        %p267 = pneg %p172
      $region30: #{_de_dy_forward.1} parent=11 // pred_check_branch
        %269 = sbr.rel (%p267) target = $region32
      $region31: #{_de_dy_forward.1} parent=11 // pred_region
        _
      $region32: #{_de_dy_forward.1} parent=11 // pred_fallthru
        _
      // Predicated region
      $region33: #{_de_dy_forward.1} parent=11 // pred_check
        %p270 = pneg %p193
      $region34: #{_de_dy_forward.1} parent=11 // pred_check_branch
        %272 = sbr.rel (%p270) target = $region36
      $region35: #{_de_dy_forward.1} parent=11 // pred_region
        _
      $region36: #{_de_dy_forward.1} parent=11 // pred_fallthru
        _
      // Predicated region
      $region37: #{_de_dy_forward.1} parent=11 // pred_check
        %p273 = pneg %p214
      $region38: #{_de_dy_forward.1} parent=11 // pred_check_branch
        %275 = sbr.rel (%p273) target = $region40
      $region39: #{_de_dy_forward.1} parent=11 // pred_region
        _
      $region40: #{_de_dy_forward.1} parent=11 // pred_fallthru
        _
    $region12: #{_de_dy_forward.1} parent=5 // pred_fallthru
      _
    %p276 = scmp.lt.s32.totalorder %s15, 2
    // Predicated region
    $region41: #{_de_dy_forward.1} parent=5 // pred_check
      %p277 = pneg %p276
    $region42: #{_de_dy_forward.1} parent=5 // pred_check_branch
      %279 = sbr.rel (%p277) target = $region44
    $region43: #{_de_dy_forward.1} parent=5 // pred_region
      // Predicated region
      $region45: #{_de_dy_forward.1} parent=43 // pred_check
        %p280 = pneg %p35
      $region46: #{_de_dy_forward.1} parent=43 // pred_check_branch
        %282 = sbr.rel (%p280) target = $region48
      $region47: #{_de_dy_forward.1} parent=43 // pred_region
        %p283 = scmp.lt.s32.totalorder %s15, 1
        %s284 = scalar_select %p283, %s15, 1
        %s285 = smul.addr %s284, 5
        %s286 = scalar_lea.vmem %s0, %s285
      $region48: #{_de_dy_forward.1} parent=43 // pred_fallthru
        _
      // Predicated region
      $region49: #{_de_dy_forward.1} parent=43 // pred_check
        %p287 = pneg %p61
      $region50: #{_de_dy_forward.1} parent=43 // pred_check_branch
        %289 = sbr.rel (%p287) target = $region52
      $region51: #{_de_dy_forward.1} parent=43 // pred_region
        %p290 = scmp.lt.s32.totalorder %s15, 1
        %s291 = scalar_select %p290, %s15, 1
        %s292 = smul.addr %s291, 3
        %s293 = scalar_lea.vmem %s1, %s292
      $region52: #{_de_dy_forward.1} parent=43 // pred_fallthru
        _
    $region44: #{_de_dy_forward.1} parent=5 // pred_fallthru
      _
    %p294 = scmp.le.s32.totalorder 1, %s15
    %p295 = scmp.lt.s32.totalorder %s15, 3
    %p296 = pnand %p294, %p295
    %p297 = pneg %p296
    // Predicated region
    $region53: #{_de_dy_forward.1} parent=5 // pred_check
      _
    $region54: #{_de_dy_forward.1} parent=5 // pred_check_branch
      %299 = sbr.rel (%p296) target = $region56
    $region55: #{_de_dy_forward.1} parent=5 // pred_region
      %s300 = ssub.s32 %s15, 1
      %p301 = scmp.lt.s32.totalorder %s20, 1
      %s302 = scalar_select %p301, %s20, 1
      %s303 = smul.addr %s302, 5
      %s304 = scalar_lea.vmem %s0, %s303
      %p305 = pneg %p41
      %p306 = pneg %p38
      %p307 = scmp.lt.s32.totalorder %s20, 1
      %s308 = scalar_select %p307, %s20, 1
      %s309 = smul.addr %s308, 3
      %s310 = scalar_lea.vmem %s1, %s309
      %p311 = pneg %p67
      %p312 = pneg %p64
      %p313 = pneg %p88
      %p314 = pneg %p85
      %p315 = pneg %p109
      %p316 = pneg %p106
      %p317 = pneg %p130
      %p318 = pneg %p127
      %p319 = pneg %p151
      %p320 = pneg %p148
      %p321 = pneg %p172
      %p322 = pneg %p169
      %p323 = pneg %p193
      %p324 = pneg %p190
      %p325 = pneg %p214
      %p326 = pneg %p211
      %p327 = pneg %p240
      %p328 = pneg %p237
      %p329 = scmp.lt.s32.totalorder %s20, 1
      %s330 = scalar_select %p329, %s20, 1
      %s331 = smul.addr %s330, 3
      %s332 = scalar_lea.vmem %s9, %s331
      %p333 = scmp.lt.s32.totalorder %s20, 1
      %s334 = scalar_select %p333, %s20, 1
      %s335 = smul.addr %s334, 5
      %s336 = scalar_lea.vmem %s0, %s335
      %p337 = scmp.lt.s32.totalorder %s20, 1
      %s338 = scalar_select %p337, %s20, 1
      %s339 = smul.addr %s338, 3
      %s340 = scalar_lea.vmem %s1, %s339
      %p341 = scmp.lt.s32.totalorder %s20, 1
      %s342 = scalar_select %p341, %s20, 1
      %s343 = smul.addr %s342, 3
      %s344 = scalar_lea.vmem %s9, %s343
      %v346 = vld [vmem:[%s336] sm:$0x1f]
      %v347 = vld [vmem:[%s2] sm:$0x1f]
      %v349 = vlaneseq
      %v350 = vshrl.u32 %v349, 7
      %v351 = vsub.s32 0, %v350
      %v352 = vrot.slane %v346, %v351
      %v353 = vlaneseq
      %v354 = vshrl.u32 %v353, 7
      %v355 = vsub.s32 1, %v354
      %v356 = vrot.slane %v346, %v355
      %v357 = vlaneseq
      %v358 = vshrl.u32 %v357, 7
      %v359 = vsub.s32 2, %v358
      %v360 = vrot.slane %v346, %v359
      %v361 = vlaneseq
      %v362 = vshrl.u32 %v361, 7
      %v363 = vsub.s32 3, %v362
      %v364 = vrot.slane %v346, %v363
      %369 = vrot.lane.b32.xlu0 %v352, 127
      %v370 = vpop.permute.xlu0 %369
      %371 = vrot.lane.b32.xlu0 %v356, 127
      %v372 = vpop.permute.xlu0 %371
      %373 = vrot.lane.b32.xlu0 %v360, 127
      %v374 = vpop.permute.xlu0 %373
      %375 = vrot.lane.b32.xlu0 %v364, 127
      %v376 = vpop.permute.xlu0 %375
      %vm377 = vcmask 1039360
      %v378 = vsel %vm377, %v370, %v372
      %v379 = vsel %vm377, %v372, %v374
      %v380 = vsel %vm377, %v374, %v376
      %385 = vrot.lane.b32.xlu0 %v352, 126
      %v386 = vpop.permute.xlu0 %385
      %387 = vrot.lane.b32.xlu0 %v356, 126
      %v388 = vpop.permute.xlu0 %387
      %389 = vrot.lane.b32.xlu0 %v360, 126
      %v390 = vpop.permute.xlu0 %389
      %391 = vrot.lane.b32.xlu0 %v364, 126
      %v392 = vpop.permute.xlu0 %391
      %vm393 = vcmask 1031168
      %v394 = vsel %vm393, %v386, %v388
      %v395 = vsel %vm393, %v388, %v390
      %v396 = vsel %vm393, %v390, %v392
      %v401 = vlaneseq
      %v402 = vshrl.u32 %v401, 7
      %v403 = vsub.s32 4, %v402
      %v404 = vrot.slane %v346, %v403
      %405 = vrot.lane.b32.xlu0 %v352, 110
      %v406 = vpop.permute.xlu0 %405
      %407 = vrot.lane.b32.xlu0 %v356, 110
      %v408 = vpop.permute.xlu0 %407
      %409 = vrot.lane.b32.xlu0 %v360, 110
      %v410 = vpop.permute.xlu0 %409
      %411 = vrot.lane.b32.xlu0 %v364, 110
      %v412 = vpop.permute.xlu0 %411
      %413 = vrot.lane.b32.xlu0 %v404, 110
      %v414 = vpop.permute.xlu0 %413
      %vm415 = vcmask 900096
      %v416 = vsel %vm415, %v406, %v408
      %v417 = vsel %vm415, %v408, %v410
      %v418 = vsel %vm415, %v410, %v412
      %v419 = vsel %vm415, %v412, %v414
      %424 = vrot.lane.b32.xlu0 %v352, 109
      %v425 = vpop.permute.xlu0 %424
      %426 = vrot.lane.b32.xlu0 %v356, 109
      %v427 = vpop.permute.xlu0 %426
      %428 = vrot.lane.b32.xlu0 %v360, 109
      %v429 = vpop.permute.xlu0 %428
      %430 = vrot.lane.b32.xlu0 %v364, 109
      %v431 = vpop.permute.xlu0 %430
      %432 = vrot.lane.b32.xlu0 %v404, 109
      %v433 = vpop.permute.xlu0 %432
      %vm434 = vcmask 891904
      %v435 = vsel %vm434, %v425, %v427
      %v436 = vsel %vm434, %v427, %v429
      %v437 = vsel %vm434, %v429, %v431
      %v438 = vsel %vm434, %v431, %v433
      %443 = vrot.lane.b32.xlu0 %v352, 108
      %v444 = vpop.permute.xlu0 %443
      %445 = vrot.lane.b32.xlu0 %v356, 108
      %v446 = vpop.permute.xlu0 %445
      %447 = vrot.lane.b32.xlu0 %v360, 108
      %v448 = vpop.permute.xlu0 %447
      %449 = vrot.lane.b32.xlu0 %v364, 108
      %v450 = vpop.permute.xlu0 %449
      %451 = vrot.lane.b32.xlu0 %v404, 108
      %v452 = vpop.permute.xlu0 %451
      %vm453 = vcmask 883712
      %v454 = vsel %vm453, %v444, %v446
      %v455 = vsel %vm453, %v446, %v448
      %v456 = vsel %vm453, %v448, %v450
      %v457 = vsel %vm453, %v450, %v452
      %462 = vrot.lane.b32.xlu0 %v352, 92
      %v463 = vpop.permute.xlu0 %462
      %464 = vrot.lane.b32.xlu0 %v356, 92
      %v465 = vpop.permute.xlu0 %464
      %466 = vrot.lane.b32.xlu0 %v360, 92
      %v467 = vpop.permute.xlu0 %466
      %468 = vrot.lane.b32.xlu0 %v364, 92
      %v469 = vpop.permute.xlu0 %468
      %470 = vrot.lane.b32.xlu0 %v404, 92
      %v471 = vpop.permute.xlu0 %470
      %vm472 = vcmask 752640
      %v473 = vsel %vm472, %v463, %v465
      %v474 = vsel %vm472, %v465, %v467
      %v475 = vsel %vm472, %v467, %v469
      %v476 = vsel %vm472, %v469, %v471
      %481 = vrot.lane.b32.xlu0 %v352, 91
      %v482 = vpop.permute.xlu0 %481
      %483 = vrot.lane.b32.xlu0 %v356, 91
      %v484 = vpop.permute.xlu0 %483
      %485 = vrot.lane.b32.xlu0 %v360, 91
      %v486 = vpop.permute.xlu0 %485
      %487 = vrot.lane.b32.xlu0 %v364, 91
      %v488 = vpop.permute.xlu0 %487
      %489 = vrot.lane.b32.xlu0 %v404, 91
      %v490 = vpop.permute.xlu0 %489
      %vm491 = vcmask 744448
      %v492 = vsel %vm491, %v482, %v484
      %v493 = vsel %vm491, %v484, %v486
      %v494 = vsel %vm491, %v486, %v488
      %v495 = vsel %vm491, %v488, %v490
      %500 = vrot.lane.b32.xlu0 %v352, 90
      %v501 = vpop.permute.xlu0 %500
      %502 = vrot.lane.b32.xlu0 %v356, 90
      %v503 = vpop.permute.xlu0 %502
      %504 = vrot.lane.b32.xlu0 %v360, 90
      %v505 = vpop.permute.xlu0 %504
      %506 = vrot.lane.b32.xlu0 %v364, 90
      %v507 = vpop.permute.xlu0 %506
      %508 = vrot.lane.b32.xlu0 %v404, 90
      %v509 = vpop.permute.xlu0 %508
      %vm510 = vcmask 736256
      %v511 = vsel %vm510, %v501, %v503
      %v512 = vsel %vm510, %v503, %v505
      %v513 = vsel %vm510, %v505, %v507
      %v514 = vsel %vm510, %v507, %v509
      %vm519 = vcmask 1040384
      %v520 = vsel %vm519, %v352, %v378
      %v521 = vsel %vm519, %v356, %v379
      %v522 = vsel %vm519, %v360, %v380
      %v523 = vsel %vm519, %v364, %v376
      %vm524 = vcmask 1041408
      %v525 = vsel %vm524, %v520, %v394
      %v526 = vsel %vm524, %v521, %v395
      %v527 = vsel %vm524, %v522, %v396
      %v528 = vsel %vm524, %v523, %v392
      %vm529 = vcmask 1042432
      %v530 = vsel %vm529, %v525, %v416
      %v531 = vsel %vm529, %v526, %v417
      %v532 = vsel %vm529, %v527, %v418
      %v533 = vsel %vm529, %v528, %v419
      %vm534 = vcmask 1043456
      %v535 = vsel %vm534, %v530, %v435
      %v536 = vsel %vm534, %v531, %v436
      %v537 = vsel %vm534, %v532, %v437
      %v538 = vsel %vm534, %v533, %v438
      %vm539 = vcmask 1044480
      %v540 = vsel %vm539, %v535, %v454
      %v541 = vsel %vm539, %v536, %v455
      %v542 = vsel %vm539, %v537, %v456
      %v543 = vsel %vm539, %v538, %v457
      %vm544 = vcmask 1045504
      %v545 = vsel %vm544, %v540, %v473
      %v546 = vsel %vm544, %v541, %v474
      %v547 = vsel %vm544, %v542, %v475
      %v548 = vsel %vm544, %v543, %v476
      %vm549 = vcmask 1046528
      %v550 = vsel %vm549, %v545, %v492
      %v551 = vsel %vm549, %v546, %v493
      %v552 = vsel %vm549, %v547, %v494
      %v553 = vsel %vm549, %v548, %v495
      %v554 = vsel %vm519, %v511, 0.0
      %v555 = vsel %vm519, %v512, 0.0
      %v556 = vsel %vm519, %v513, 0.0
      %v557 = vsel %vm519, %v514, 0.0
      %v558 = vpack.c.bf16 %v554, %v550
      %v559 = vpack.c.bf16 %v555, %v551
      %v560 = vpack.c.bf16 %v556, %v552
      %v561 = vpack.c.bf16 %v557, %v553
      %v562 = vld [vmem:[%s3] sm:$0xf]
      %v563 = vld [vmem:[%s3 + $0x4] sm:$0xf]
      %v564 = vld [vmem:[%s3 + $0x8] sm:$0xf]
      %v565 = vld [vmem:[%s3 + $0xc] sm:$0xf]
      %v566 = vld [vmem:[%s4] sm:$0xff]
      %v567 = vld [vmem:[%s4 + $0x8] sm:$0xff]
      %v568 = vld [vmem:[%s4 + $0x10] sm:$0xff]
      %v569 = vld [vmem:[%s4 + $0x18] sm:$0xff]
      %571 = vset.pattern.permute.xlu0 0
      %572 = vperm.xlu0 %571, %v566
      %v573 = vpop.permute.xlu0 %572
      %576 = vset.pattern.permute.xlu0 0
      %577 = vperm.xlu0 %576, %v567
      %v578 = vpop.permute.xlu0 %577
      %581 = vset.pattern.permute.xlu0 0
      %582 = vperm.xlu0 %581, %v568
      %v583 = vpop.permute.xlu0 %582
      %586 = vset.pattern.permute.xlu0 0
      %587 = vperm.xlu0 %586, %v569
      %v588 = vpop.permute.xlu0 %587
      %v594 = vunpack.c.l.b16 %v562
      %v595 = vunpack.c.l.b16 %v563
      %v596 = vunpack.c.l.b16 %v564
      %v597 = vunpack.c.l.b16 %v565
      %v598 = vpack.c.b16 %v595, %v594
      %v599 = vpack.c.b16 %v597, %v596
      %vm600 = vcmask 130048
      %v602 = vsel %vm600, %v598, 0
      %v605 = vsel %vm600, %v599, 0
      %607 = vmatprep.subr.bf16.mxu0 0
      %608 = vmatpush1.bf16.msra.mxu0 0
      %609 = vmatprep.subr.bf16.mxu0 0
      %610 = vmatpush1.bf16.msra.mxu0 0
      %611 = vmatprep.subr.bf16.mxu0 0
      %612 = vmatpush1.bf16.msra.mxu0 0
      %613 = vmatprep.subr.bf16.mxu0 0
      %614 = vmatpush1.bf16.msra.mxu0 0
      %615 = vmatprep.subr.bf16.mxu0 0
      %616 = vmatpush1.bf16.msra.mxu0 0
      %617 = vmatprep.subr.bf16.mxu0 0
      %618 = vmatpush1.bf16.msra.mxu0 0
      %619 = vmatprep.subr.bf16.mxu0 0
      %620 = vmatpush1.bf16.msra.mxu0 0
      %621 = vmatprep.subr.bf16.mxu0 %v559
      %622 = vmatpush1.bf16.msra.mxu0 %v558
      %623 = vmatprep.subr.bf16.mxu0 0
      %624 = vmatpush2.bf16.msra.mxu0 0
      %625 = vmatprep.subr.bf16.mxu0 0
      %626 = vmatpush2.bf16.msra.mxu0 0
      %627 = vmatprep.subr.bf16.mxu0 0
      %628 = vmatpush2.bf16.msra.mxu0 0
      %629 = vmatprep.subr.bf16.mxu0 0
      %630 = vmatpush2.bf16.msra.mxu0 0
      %631 = vmatprep.subr.bf16.mxu0 0
      %632 = vmatpush2.bf16.msra.mxu0 0
      %633 = vmatprep.subr.bf16.mxu0 0
      %634 = vmatpush2.bf16.msra.mxu0 0
      %635 = vmatprep.subr.bf16.mxu0 0
      %636 = vmatpush2.bf16.msra.mxu0 0
      %637 = vmatprep.subr.bf16.mxu0 0
      %638 = vmatpush2.bf16.msra.mxu0 0
      %639 = vmatprep.mubr.bf16.mxu0 0
      %640 = vmatmul.mubr.bf16.gmra.mxu0 %v602
      %v641 = vpop.f32.mrf.mxu0
      %v642 = vadd.f32 %v573, %v641
      %v643 = vpop.f32.mrf.mxu0
      %v644 = vadd.f32 %v573, %v643
      %v645 = vpop.f32.mrf.mxu0
      %v646 = vadd.f32 %v578, %v645
      %v647 = vpop.f32.mrf.mxu0
      %v648 = vadd.f32 %v578, %v647
      %649 = vmatprep.mubr.bf16.mxu0 0
      %650 = vmatmul.mubr.bf16.gmra.mxu0 %v605
      %v651 = vpop.f32.mrf.mxu0
      %v652 = vadd.f32 %v583, %v651
      %v653 = vpop.f32.mrf.mxu0
      %v654 = vadd.f32 %v583, %v653
      %v655 = vpop.f32.mrf.mxu0
      %v656 = vadd.f32 %v588, %v655
      %v657 = vpop.f32.mrf.mxu0
      %v658 = vadd.f32 %v588, %v657
      %659 = vdwg.mxu0
      %660 = vmatprep.subr.bf16.mxu0 0
      %661 = vmatpush1.bf16.msra.mxu0 0
      %662 = vmatprep.subr.bf16.mxu0 0
      %663 = vmatpush1.bf16.msra.mxu0 0
      %664 = vmatprep.subr.bf16.mxu0 0
      %665 = vmatpush1.bf16.msra.mxu0 0
      %666 = vmatprep.subr.bf16.mxu0 0
      %667 = vmatpush1.bf16.msra.mxu0 0
      %668 = vmatprep.subr.bf16.mxu0 0
      %669 = vmatpush1.bf16.msra.mxu0 0
      %670 = vmatprep.subr.bf16.mxu0 0
      %671 = vmatpush1.bf16.msra.mxu0 0
      %672 = vmatprep.subr.bf16.mxu0 0
      %673 = vmatpush1.bf16.msra.mxu0 0
      %674 = vmatprep.subr.bf16.mxu0 %v561
      %675 = vmatpush1.bf16.msra.mxu0 %v560
      %676 = vmatprep.subr.bf16.mxu0 0
      %677 = vmatpush2.bf16.msra.mxu0 0
      %678 = vmatprep.subr.bf16.mxu0 0
      %679 = vmatpush2.bf16.msra.mxu0 0
      %680 = vmatprep.subr.bf16.mxu0 0
      %681 = vmatpush2.bf16.msra.mxu0 0
      %682 = vmatprep.subr.bf16.mxu0 0
      %683 = vmatpush2.bf16.msra.mxu0 0
      %684 = vmatprep.subr.bf16.mxu0 0
      %685 = vmatpush2.bf16.msra.mxu0 0
      %686 = vmatprep.subr.bf16.mxu0 0
      %687 = vmatpush2.bf16.msra.mxu0 0
      %688 = vmatprep.subr.bf16.mxu0 0
      %689 = vmatpush2.bf16.msra.mxu0 0
      %690 = vmatprep.subr.bf16.mxu0 0
      %691 = vmatpush2.bf16.msra.mxu0 0
      %692 = vmatprep.mubr.bf16.mxu0 0
      %693 = vmatmul.mubr.bf16.gmra.mxu0 %v602
      %v694 = vpop.f32.mrf.mxu0
      %v695 = vadd.f32 %v573, %v694
      %v696 = vpop.f32.mrf.mxu0
      %v697 = vadd.f32 %v573, %v696
      %v698 = vpop.f32.mrf.mxu0
      %v699 = vadd.f32 %v578, %v698
      %v700 = vpop.f32.mrf.mxu0
      %v701 = vadd.f32 %v578, %v700
      %702 = vmatprep.mubr.bf16.mxu0 0
      %703 = vmatmul.mubr.bf16.gmra.mxu0 %v605
      %v704 = vpop.f32.mrf.mxu0
      %v705 = vadd.f32 %v583, %v704
      %v706 = vpop.f32.mrf.mxu0
      %v707 = vadd.f32 %v583, %v706
      %v708 = vpop.f32.mrf.mxu0
      %v709 = vadd.f32 %v588, %v708
      %v710 = vpop.f32.mrf.mxu0
      %v711 = vadd.f32 %v588, %v710
      %712 = vdwg.mxu0
      %v713 = vand.u32 2147483647, %v642
      %v714 = vand.u32 2147483647, %v644
      %v715 = vand.u32 2147483647, %v695
      %v716 = vand.u32 2147483647, %v697
      %v717 = vand.u32 2147483647, %v646
      %v718 = vand.u32 2147483647, %v648
      %v719 = vand.u32 2147483647, %v699
      %v720 = vand.u32 2147483647, %v701
      %v721 = vand.u32 2147483647, %v652
      %v722 = vand.u32 2147483647, %v654
      %v723 = vand.u32 2147483647, %v705
      %v724 = vand.u32 2147483647, %v707
      %v725 = vand.u32 2147483647, %v656
      %v726 = vand.u32 2147483647, %v658
      %v727 = vand.u32 2147483647, %v709
      %v728 = vand.u32 2147483647, %v711
      %v729 = vsub.f32 0.0, %v713
      %v730 = vsub.f32 0.0, %v714
      %v731 = vsub.f32 0.0, %v715
      %v732 = vsub.f32 0.0, %v716
      %v733 = vsub.f32 0.0, %v717
      %v734 = vsub.f32 0.0, %v718
      %v735 = vsub.f32 0.0, %v719
      %v736 = vsub.f32 0.0, %v720
      %v737 = vsub.f32 0.0, %v721
      %v738 = vsub.f32 0.0, %v722
      %v739 = vsub.f32 0.0, %v723
      %v740 = vsub.f32 0.0, %v724
      %v741 = vsub.f32 0.0, %v725
      %v742 = vsub.f32 0.0, %v726
      %v743 = vsub.f32 0.0, %v727
      %v744 = vsub.f32 0.0, %v728
      %v745 = vmul.f32 %v729, 1.442695
      %v746 = vpow.pop %v745
      %v747 = vmul.f32 %v730, 1.442695
      %v748 = vpow.pop %v747
      %v749 = vmul.f32 %v731, 1.442695
      %v750 = vpow.pop %v749
      %v751 = vmul.f32 %v732, 1.442695
      %v752 = vpow.pop %v751
      %v753 = vmul.f32 %v733, 1.442695
      %v754 = vpow.pop %v753
      %v755 = vmul.f32 %v734, 1.442695
      %v756 = vpow.pop %v755
      %v757 = vmul.f32 %v735, 1.442695
      %v758 = vpow.pop %v757
      %v759 = vmul.f32 %v736, 1.442695
      %v760 = vpow.pop %v759
      %v761 = vmul.f32 %v737, 1.442695
      %v762 = vpow.pop %v761
      %v763 = vmul.f32 %v738, 1.442695
      %v764 = vpow.pop %v763
      %v765 = vmul.f32 %v739, 1.442695
      %v766 = vpow.pop %v765
      %v767 = vmul.f32 %v740, 1.442695
      %v768 = vpow.pop %v767
      %v769 = vmul.f32 %v741, 1.442695
      %v770 = vpow.pop %v769
      %v771 = vmul.f32 %v742, 1.442695
      %v772 = vpow.pop %v771
      %v773 = vmul.f32 %v743, 1.442695
      %v774 = vpow.pop %v773
      %v775 = vmul.f32 %v744, 1.442695
      %v776 = vpow.pop %v775
      %v777 = vadd.f32 %v746, 1.0
      %v778 = vadd.f32 %v748, 1.0
      %v779 = vadd.f32 %v750, 1.0
      %v780 = vadd.f32 %v752, 1.0
      %v781 = vadd.f32 %v754, 1.0
      %v782 = vadd.f32 %v756, 1.0
      %v783 = vadd.f32 %v758, 1.0
      %v784 = vadd.f32 %v760, 1.0
      %v785 = vadd.f32 %v762, 1.0
      %v786 = vadd.f32 %v764, 1.0
      %v787 = vadd.f32 %v766, 1.0
      %v788 = vadd.f32 %v768, 1.0
      %v789 = vadd.f32 %v770, 1.0
      %v790 = vadd.f32 %v772, 1.0
      %v791 = vadd.f32 %v774, 1.0
      %v792 = vadd.f32 %v776, 1.0
      %v793 = vrcp.pop %v777
      %v794 = vrcp.pop %v778
      %v795 = vrcp.pop %v779
      %v796 = vrcp.pop %v780
      %v797 = vrcp.pop %v781
      %v798 = vrcp.pop %v782
      %v799 = vrcp.pop %v783
      %v800 = vrcp.pop %v784
      %v801 = vrcp.pop %v785
      %v802 = vrcp.pop %v786
      %v803 = vrcp.pop %v787
      %v804 = vrcp.pop %v788
      %v805 = vrcp.pop %v789
      %v806 = vrcp.pop %v790
      %v807 = vrcp.pop %v791
      %v808 = vrcp.pop %v792
      %v809 = vmax.f32 %v642, 0.0
      %v810 = vmax.f32 %v644, 0.0
      %v811 = vmax.f32 %v695, 0.0
      %v812 = vmax.f32 %v697, 0.0
      %v813 = vmax.f32 %v646, 0.0
      %v814 = vmax.f32 %v648, 0.0
      %v815 = vmax.f32 %v699, 0.0
      %v816 = vmax.f32 %v701, 0.0
      %v817 = vmax.f32 %v652, 0.0
      %v818 = vmax.f32 %v654, 0.0
      %v819 = vmax.f32 %v705, 0.0
      %v820 = vmax.f32 %v707, 0.0
      %v821 = vmax.f32 %v656, 0.0
      %v822 = vmax.f32 %v658, 0.0
      %v823 = vmax.f32 %v709, 0.0
      %v824 = vmax.f32 %v711, 0.0
      %v825 = vlog2.pop %v777
      %v826 = vmul.f32 %v825, 0.6931472
      %v827 = vlog2.pop %v778
      %v828 = vmul.f32 %v827, 0.6931472
      %v829 = vlog2.pop %v779
      %v830 = vmul.f32 %v829, 0.6931472
      %v831 = vlog2.pop %v780
      %v832 = vmul.f32 %v831, 0.6931472
      %v833 = vlog2.pop %v781
      %v834 = vmul.f32 %v833, 0.6931472
      %v835 = vlog2.pop %v782
      %v836 = vmul.f32 %v835, 0.6931472
      %v837 = vlog2.pop %v783
      %v838 = vmul.f32 %v837, 0.6931472
      %v839 = vlog2.pop %v784
      %v840 = vmul.f32 %v839, 0.6931472
      %v841 = vlog2.pop %v785
      %v842 = vmul.f32 %v841, 0.6931472
      %v843 = vlog2.pop %v786
      %v844 = vmul.f32 %v843, 0.6931472
      %v845 = vlog2.pop %v787
      %v846 = vmul.f32 %v845, 0.6931472
      %v847 = vlog2.pop %v788
      %v848 = vmul.f32 %v847, 0.6931472
      %v849 = vlog2.pop %v789
      %v850 = vmul.f32 %v849, 0.6931472
      %v851 = vlog2.pop %v790
      %v852 = vmul.f32 %v851, 0.6931472
      %v853 = vlog2.pop %v791
      %v854 = vmul.f32 %v853, 0.6931472
      %v855 = vlog2.pop %v792
      %v856 = vmul.f32 %v855, 0.6931472
      %v857 = vadd.f32 %v809, %v826
      %v858 = vadd.f32 %v810, %v828
      %v859 = vadd.f32 %v811, %v830
      %v860 = vadd.f32 %v812, %v832
      %v861 = vadd.f32 %v813, %v834
      %v862 = vadd.f32 %v814, %v836
      %v863 = vadd.f32 %v815, %v838
      %v864 = vadd.f32 %v816, %v840
      %v865 = vadd.f32 %v817, %v842
      %v866 = vadd.f32 %v818, %v844
      %v867 = vadd.f32 %v819, %v846
      %v868 = vadd.f32 %v820, %v848
      %v869 = vadd.f32 %v821, %v850
      %v870 = vadd.f32 %v822, %v852
      %v871 = vadd.f32 %v823, %v854
      %v872 = vadd.f32 %v824, %v856
      %v874 = vlaneseq
      %v875 = vshrl.u32 %v874, 7
      %v876 = vsub.s32 0, %v875
      %v877 = vrot.slane %v347, %v876
      %v878 = vlaneseq
      %v879 = vshrl.u32 %v878, 7
      %v880 = vsub.s32 1, %v879
      %v881 = vrot.slane %v347, %v880
      %v882 = vlaneseq
      %v883 = vshrl.u32 %v882, 7
      %v884 = vsub.s32 2, %v883
      %v885 = vrot.slane %v347, %v884
      %v886 = vlaneseq
      %v887 = vshrl.u32 %v886, 7
      %v888 = vsub.s32 3, %v887
      %v889 = vrot.slane %v347, %v888
      %v890 = vlaneseq
      %v891 = vshrl.u32 %v890, 7
      %v892 = vsub.s32 4, %v891
      %v893 = vrot.slane %v347, %v892
      %894 = vrot.lane.b32.xlu0 %v877, 109
      %v895 = vpop.permute.xlu0 %894
      %896 = vrot.lane.b32.xlu0 %v881, 109
      %v897 = vpop.permute.xlu0 %896
      %898 = vrot.lane.b32.xlu0 %v885, 109
      %v899 = vpop.permute.xlu0 %898
      %900 = vrot.lane.b32.xlu0 %v889, 109
      %v901 = vpop.permute.xlu0 %900
      %902 = vrot.lane.b32.xlu0 %v893, 109
      %v903 = vpop.permute.xlu0 %902
      %v904 = vsel %vm434, %v895, %v897
      %v905 = vsel %vm434, %v897, %v899
      %v906 = vsel %vm434, %v899, %v901
      %v907 = vsel %vm434, %v901, %v903
      %v912 = vmul.f32 %v857, %v904
      %v913 = vmul.f32 %v858, %v905
      %v914 = vmul.f32 %v859, %v906
      %v915 = vmul.f32 %v860, %v907
      %v916 = vmul.f32 %v861, %v904
      %v917 = vmul.f32 %v862, %v905
      %v918 = vmul.f32 %v863, %v906
      %v919 = vmul.f32 %v864, %v907
      %v920 = vmul.f32 %v865, %v904
      %v921 = vmul.f32 %v866, %v905
      %v922 = vmul.f32 %v867, %v906
      %v923 = vmul.f32 %v868, %v907
      %v924 = vmul.f32 %v869, %v904
      %v925 = vmul.f32 %v870, %v905
      %v926 = vmul.f32 %v871, %v906
      %v927 = vmul.f32 %v872, %v907
      %vm928 = vcmp.ge.f32.partialorder %v642, 0.0
      %vm929 = vcmp.ge.f32.partialorder %v644, 0.0
      %vm930 = vcmp.ge.f32.partialorder %v695, 0.0
      %vm931 = vcmp.ge.f32.partialorder %v697, 0.0
      %vm932 = vcmp.ge.f32.partialorder %v646, 0.0
      %vm933 = vcmp.ge.f32.partialorder %v648, 0.0
      %vm934 = vcmp.ge.f32.partialorder %v699, 0.0
      %vm935 = vcmp.ge.f32.partialorder %v701, 0.0
      %vm936 = vcmp.ge.f32.partialorder %v652, 0.0
      %vm937 = vcmp.ge.f32.partialorder %v654, 0.0
      %vm938 = vcmp.ge.f32.partialorder %v705, 0.0
      %vm939 = vcmp.ge.f32.partialorder %v707, 0.0
      %vm940 = vcmp.ge.f32.partialorder %v656, 0.0
      %vm941 = vcmp.ge.f32.partialorder %v658, 0.0
      %vm942 = vcmp.ge.f32.partialorder %v709, 0.0
      %vm943 = vcmp.ge.f32.partialorder %v711, 0.0
      %v944 = vmul.f32 %v746, %v793
      %v945 = vmul.f32 %v748, %v794
      %v946 = vmul.f32 %v750, %v795
      %v947 = vmul.f32 %v752, %v796
      %v948 = vmul.f32 %v754, %v797
      %v949 = vmul.f32 %v756, %v798
      %v950 = vmul.f32 %v758, %v799
      %v951 = vmul.f32 %v760, %v800
      %v952 = vmul.f32 %v762, %v801
      %v953 = vmul.f32 %v764, %v802
      %v954 = vmul.f32 %v766, %v803
      %v955 = vmul.f32 %v768, %v804
      %v956 = vmul.f32 %v770, %v805
      %v957 = vmul.f32 %v772, %v806
      %v958 = vmul.f32 %v774, %v807
      %v959 = vmul.f32 %v776, %v808
      %v960 = vsel %vm928, %v793, %v944
      %v961 = vsel %vm929, %v794, %v945
      %v962 = vsel %vm930, %v795, %v946
      %v963 = vsel %vm931, %v796, %v947
      %v964 = vsel %vm932, %v797, %v948
      %v965 = vsel %vm933, %v798, %v949
      %v966 = vsel %vm934, %v799, %v950
      %v967 = vsel %vm935, %v800, %v951
      %v968 = vsel %vm936, %v801, %v952
      %v969 = vsel %vm937, %v802, %v953
      %v970 = vsel %vm938, %v803, %v954
      %v971 = vsel %vm939, %v804, %v955
      %v972 = vsel %vm940, %v805, %v956
      %v973 = vsel %vm941, %v806, %v957
      %v974 = vsel %vm942, %v807, %v958
      %v975 = vsel %vm943, %v808, %v959
      %v976 = vpack.c.bf16 %v916, %v912
      %v977 = vpack.c.bf16 %v917, %v913
      %v978 = vpack.c.bf16 %v918, %v914
      %v979 = vpack.c.bf16 %v919, %v915
      %v980 = vpack.c.bf16 %v924, %v920
      %v981 = vpack.c.bf16 %v925, %v921
      %v982 = vpack.c.bf16 %v926, %v922
      %v983 = vpack.c.bf16 %v927, %v923
      %992 = vrot.lane.b32.xlu0 %v976, 127
      %v993 = vpop.permute.xlu0 %992
      %994 = vrot.lane.b32.xlu0 %v977, 127
      %v995 = vpop.permute.xlu0 %994
      %996 = vrot.lane.b32.xlu0 %v978, 127
      %v997 = vpop.permute.xlu0 %996
      %998 = vrot.lane.b32.xlu0 %v979, 127
      %v999 = vpop.permute.xlu0 %998
      %1000 = vrot.lane.b32.xlu0 %v980, 127
      %v1001 = vpop.permute.xlu0 %1000
      %1002 = vrot.lane.b32.xlu0 %v981, 127
      %v1003 = vpop.permute.xlu0 %1002
      %1004 = vrot.lane.b32.xlu0 %v982, 127
      %v1005 = vpop.permute.xlu0 %1004
      %1006 = vrot.lane.b32.xlu0 %v983, 127
      %v1007 = vpop.permute.xlu0 %1006
      %vm1008 = vcmask 1039360
      %v1009 = vsel %vm1008, %v993, %v995
      %v1010 = vsel %vm1008, %v995, %v997
      %v1011 = vsel %vm1008, %v997, %v999
      %v1012 = vsel %vm1008, %v1001, %v1003
      %v1013 = vsel %vm1008, %v1003, %v1005
      %v1014 = vsel %vm1008, %v1005, %v1007
      %1023 = vrot.lane.b32.xlu0 %v976, 126
      %v1024 = vpop.permute.xlu0 %1023
      %1025 = vrot.lane.b32.xlu0 %v977, 126
      %v1026 = vpop.permute.xlu0 %1025
      %1027 = vrot.lane.b32.xlu0 %v978, 126
      %v1028 = vpop.permute.xlu0 %1027
      %1029 = vrot.lane.b32.xlu0 %v979, 126
      %v1030 = vpop.permute.xlu0 %1029
      %1031 = vrot.lane.b32.xlu0 %v980, 126
      %v1032 = vpop.permute.xlu0 %1031
      %1033 = vrot.lane.b32.xlu0 %v981, 126
      %v1034 = vpop.permute.xlu0 %1033
      %1035 = vrot.lane.b32.xlu0 %v982, 126
      %v1036 = vpop.permute.xlu0 %1035
      %1037 = vrot.lane.b32.xlu0 %v983, 126
      %v1038 = vpop.permute.xlu0 %1037
      %vm1039 = vcmask 1031168
      %v1040 = vsel %vm1039, %v1024, %v1026
      %v1041 = vsel %vm1039, %v1026, %v1028
      %v1042 = vsel %vm1039, %v1028, %v1030
      %v1043 = vsel %vm1039, %v1032, %v1034
      %v1044 = vsel %vm1039, %v1034, %v1036
      %v1045 = vsel %vm1039, %v1036, %v1038
      %1054 = vrot.lane.b32.xlu0 %v976, 110
      %v1055 = vpop.permute.xlu0 %1054
      %1056 = vrot.lane.b32.xlu0 %v977, 110
      %v1057 = vpop.permute.xlu0 %1056
      %1058 = vrot.lane.b32.xlu0 %v978, 110
      %v1059 = vpop.permute.xlu0 %1058
      %1060 = vrot.lane.b32.xlu0 %v979, 110
      %v1061 = vpop.permute.xlu0 %1060
      %1062 = vrot.lane.b32.xlu0 %v980, 110
      %v1063 = vpop.permute.xlu0 %1062
      %1064 = vrot.lane.b32.xlu0 %v981, 110
      %v1065 = vpop.permute.xlu0 %1064
      %1066 = vrot.lane.b32.xlu0 %v982, 110
      %v1067 = vpop.permute.xlu0 %1066
      %1068 = vrot.lane.b32.xlu0 %v983, 110
      %v1069 = vpop.permute.xlu0 %1068
      %vm1070 = vcmask 900096
      %v1071 = vsel %vm1070, %v1055, %v1057
      %v1072 = vsel %vm1070, %v1057, %v1059
      %v1073 = vsel %vm1070, %v1059, %v1061
      %v1074 = vsel %vm1070, %v1063, %v1065
      %v1075 = vsel %vm1070, %v1065, %v1067
      %v1076 = vsel %vm1070, %v1067, %v1069
      %1085 = vrot.lane.b32.xlu0 %v976, 109
      %v1086 = vpop.permute.xlu0 %1085
      %1087 = vrot.lane.b32.xlu0 %v977, 109
      %v1088 = vpop.permute.xlu0 %1087
      %1089 = vrot.lane.b32.xlu0 %v978, 109
      %v1090 = vpop.permute.xlu0 %1089
      %1091 = vrot.lane.b32.xlu0 %v979, 109
      %v1092 = vpop.permute.xlu0 %1091
      %1093 = vrot.lane.b32.xlu0 %v980, 109
      %v1094 = vpop.permute.xlu0 %1093
      %1095 = vrot.lane.b32.xlu0 %v981, 109
      %v1096 = vpop.permute.xlu0 %1095
      %1097 = vrot.lane.b32.xlu0 %v982, 109
      %v1098 = vpop.permute.xlu0 %1097
      %1099 = vrot.lane.b32.xlu0 %v983, 109
      %v1100 = vpop.permute.xlu0 %1099
      %vm1101 = vcmask 891904
      %v1102 = vsel %vm1101, %v1086, %v1088
      %v1103 = vsel %vm1101, %v1088, %v1090
      %v1104 = vsel %vm1101, %v1090, %v1092
      %v1105 = vsel %vm1101, %v1094, %v1096
      %v1106 = vsel %vm1101, %v1096, %v1098
      %v1107 = vsel %vm1101, %v1098, %v1100
      %1116 = vrot.lane.b32.xlu0 %v976, 108
      %v1117 = vpop.permute.xlu0 %1116
      %1118 = vrot.lane.b32.xlu0 %v977, 108
      %v1119 = vpop.permute.xlu0 %1118
      %1120 = vrot.lane.b32.xlu0 %v978, 108
      %v1121 = vpop.permute.xlu0 %1120
      %1122 = vrot.lane.b32.xlu0 %v979, 108
      %v1123 = vpop.permute.xlu0 %1122
      %1124 = vrot.lane.b32.xlu0 %v980, 108
      %v1125 = vpop.permute.xlu0 %1124
      %1126 = vrot.lane.b32.xlu0 %v981, 108
      %v1127 = vpop.permute.xlu0 %1126
      %1128 = vrot.lane.b32.xlu0 %v982, 108
      %v1129 = vpop.permute.xlu0 %1128
      %1130 = vrot.lane.b32.xlu0 %v983, 108
      %v1131 = vpop.permute.xlu0 %1130
      %vm1132 = vcmask 883712
      %v1133 = vsel %vm1132, %v1117, %v1119
      %v1134 = vsel %vm1132, %v1119, %v1121
      %v1135 = vsel %vm1132, %v1121, %v1123
      %v1136 = vsel %vm1132, %v1125, %v1127
      %v1137 = vsel %vm1132, %v1127, %v1129
      %v1138 = vsel %vm1132, %v1129, %v1131
      %1147 = vrot.lane.b32.xlu0 %v976, 92
      %v1148 = vpop.permute.xlu0 %1147
      %1149 = vrot.lane.b32.xlu0 %v977, 92
      %v1150 = vpop.permute.xlu0 %1149
      %1151 = vrot.lane.b32.xlu0 %v978, 92
      %v1152 = vpop.permute.xlu0 %1151
      %1153 = vrot.lane.b32.xlu0 %v979, 92
      %v1154 = vpop.permute.xlu0 %1153
      %1155 = vrot.lane.b32.xlu0 %v980, 92
      %v1156 = vpop.permute.xlu0 %1155
      %1157 = vrot.lane.b32.xlu0 %v981, 92
      %v1158 = vpop.permute.xlu0 %1157
      %1159 = vrot.lane.b32.xlu0 %v982, 92
      %v1160 = vpop.permute.xlu0 %1159
      %1161 = vrot.lane.b32.xlu0 %v983, 92
      %v1162 = vpop.permute.xlu0 %1161
      %vm1163 = vcmask 752640
      %v1164 = vsel %vm1163, %v1148, %v1150
      %v1165 = vsel %vm1163, %v1150, %v1152
      %v1166 = vsel %vm1163, %v1152, %v1154
      %v1167 = vsel %vm1163, %v1156, %v1158
      %v1168 = vsel %vm1163, %v1158, %v1160
      %v1169 = vsel %vm1163, %v1160, %v1162
      %1178 = vrot.lane.b32.xlu0 %v976, 91
      %v1179 = vpop.permute.xlu0 %1178
      %1180 = vrot.lane.b32.xlu0 %v977, 91
      %v1181 = vpop.permute.xlu0 %1180
      %1182 = vrot.lane.b32.xlu0 %v978, 91
      %v1183 = vpop.permute.xlu0 %1182
      %1184 = vrot.lane.b32.xlu0 %v979, 91
      %v1185 = vpop.permute.xlu0 %1184
      %1186 = vrot.lane.b32.xlu0 %v980, 91
      %v1187 = vpop.permute.xlu0 %1186
      %1188 = vrot.lane.b32.xlu0 %v981, 91
      %v1189 = vpop.permute.xlu0 %1188
      %1190 = vrot.lane.b32.xlu0 %v982, 91
      %v1191 = vpop.permute.xlu0 %1190
      %1192 = vrot.lane.b32.xlu0 %v983, 91
      %v1193 = vpop.permute.xlu0 %1192
      %vm1194 = vcmask 744448
      %v1195 = vsel %vm1194, %v1179, %v1181
      %v1196 = vsel %vm1194, %v1181, %v1183
      %v1197 = vsel %vm1194, %v1183, %v1185
      %v1198 = vsel %vm1194, %v1187, %v1189
      %v1199 = vsel %vm1194, %v1189, %v1191
      %v1200 = vsel %vm1194, %v1191, %v1193
      %1209 = vrot.lane.b32.xlu0 %v976, 90
      %v1210 = vpop.permute.xlu0 %1209
      %1211 = vrot.lane.b32.xlu0 %v977, 90
      %v1212 = vpop.permute.xlu0 %1211
      %1213 = vrot.lane.b32.xlu0 %v978, 90
      %v1214 = vpop.permute.xlu0 %1213
      %1215 = vrot.lane.b32.xlu0 %v979, 90
      %v1216 = vpop.permute.xlu0 %1215
      %1217 = vrot.lane.b32.xlu0 %v980, 90
      %v1218 = vpop.permute.xlu0 %1217
      %1219 = vrot.lane.b32.xlu0 %v981, 90
      %v1220 = vpop.permute.xlu0 %1219
      %1221 = vrot.lane.b32.xlu0 %v982, 90
      %v1222 = vpop.permute.xlu0 %1221
      %1223 = vrot.lane.b32.xlu0 %v983, 90
      %v1224 = vpop.permute.xlu0 %1223
      %vm1225 = vcmask 736256
      %v1226 = vsel %vm1225, %v1210, %v1212
      %v1227 = vsel %vm1225, %v1212, %v1214
      %v1228 = vsel %vm1225, %v1214, %v1216
      %v1229 = vsel %vm1225, %v1218, %v1220
      %v1230 = vsel %vm1225, %v1220, %v1222
      %v1231 = vsel %vm1225, %v1222, %v1224
      %v1240 = vld [vmem:[%s5] sm:$0xff]
      %v1241 = vld [vmem:[%s5 + $0x8] sm:$0xf]
      %v1242 = vld [vmem:[%s5 + $0xc] sm:$0xff]
      %v1243 = vld [vmem:[%s5 + $0x14] sm:$0xf]
      %v1244 = vld [vmem:[%s5 + $0x18] sm:$0xff]
      %v1245 = vld [vmem:[%s5 + $0x20] sm:$0xf]
      %v1246 = vld [vmem:[%s5 + $0x24] sm:$0xff]
      %v1247 = vld [vmem:[%s5 + $0x2c] sm:$0xf]
      %v1248 = vld [vmem:[%s6] sm:$0xff]
      %v1249 = vld [vmem:[%s6 + $0x8] sm:$0xff]
      %v1250 = vld [vmem:[%s6 + $0x10] sm:$0xff]
      %v1251 = vld [vmem:[%s6 + $0x18] sm:$0xff]
      %1253 = vset.pattern.permute.xlu0 0
      %1254 = vperm.xlu0 %1253, %v1248
      %v1255 = vpop.permute.xlu0 %1254
      %1258 = vset.pattern.permute.xlu0 0
      %1259 = vperm.xlu0 %1258, %v1249
      %v1260 = vpop.permute.xlu0 %1259
      %1263 = vset.pattern.permute.xlu0 0
      %1264 = vperm.xlu0 %1263, %v1250
      %v1265 = vpop.permute.xlu0 %1264
      %1268 = vset.pattern.permute.xlu0 0
      %1269 = vperm.xlu0 %1268, %v1251
      %v1270 = vpop.permute.xlu0 %1269
      %v1280 = vunpack.c.l.b16 %v1240
      %v1281 = vunpack.c.h.b16 %v1240
      %v1282 = vunpack.c.l.b16 %v1241
      %v1283 = vunpack.c.l.b16 %v1242
      %v1284 = vunpack.c.h.b16 %v1242
      %v1285 = vunpack.c.l.b16 %v1243
      %v1286 = vunpack.c.l.b16 %v1244
      %v1287 = vunpack.c.h.b16 %v1244
      %v1288 = vunpack.c.l.b16 %v1245
      %v1289 = vunpack.c.l.b16 %v1246
      %v1290 = vunpack.c.h.b16 %v1246
      %v1291 = vunpack.c.l.b16 %v1247
      %v1292 = vpack.c.b16 %v1283, %v1280
      %v1293 = vpack.c.b16 %v1284, %v1281
      %v1294 = vpack.c.b16 %v1285, %v1282
      %v1295 = vpack.c.b16 %v1289, %v1286
      %v1296 = vpack.c.b16 %v1290, %v1287
      %v1297 = vpack.c.b16 %v1291, %v1288
      %vm1302 = vcmask 261120
      %v1304 = vsel %vm1302, %v1294, 0
      %v1307 = vsel %vm1302, %v1297, 0
      %1309 = vmatprep.subr.bf16.mxu0 %v1075
      %1310 = vmatpush1.bf16.msra.mxu0 %v1074
      %1311 = vmatprep.subr.bf16.mxu0 %v1072
      %1312 = vmatpush1.bf16.msra.mxu0 %v1071
      %1313 = vmatprep.subr.bf16.mxu0 %v1044
      %1314 = vmatpush1.bf16.msra.mxu0 %v1043
      %1315 = vmatprep.subr.bf16.mxu0 %v1041
      %1316 = vmatpush1.bf16.msra.mxu0 %v1040
      %1317 = vmatprep.subr.bf16.mxu0 %v1013
      %1318 = vmatpush1.bf16.msra.mxu0 %v1012
      %1319 = vmatprep.subr.bf16.mxu0 %v1010
      %1320 = vmatpush1.bf16.msra.mxu0 %v1009
      %1321 = vmatprep.subr.bf16.mxu0 %v981
      %1322 = vmatpush1.bf16.msra.mxu0 %v980
      %1323 = vmatprep.subr.bf16.mxu0 %v977
      %1324 = vmatpush1.bf16.msra.mxu0 %v976
      %1325 = vmatprep.subr.bf16.mxu0 %v1199
      %1326 = vmatpush2.bf16.msra.mxu0 %v1198
      %1327 = vmatprep.subr.bf16.mxu0 %v1196
      %1328 = vmatpush2.bf16.msra.mxu0 %v1195
      %1329 = vmatprep.subr.bf16.mxu0 %v1168
      %1330 = vmatpush2.bf16.msra.mxu0 %v1167
      %1331 = vmatprep.subr.bf16.mxu0 %v1165
      %1332 = vmatpush2.bf16.msra.mxu0 %v1164
      %1333 = vmatprep.subr.bf16.mxu0 %v1137
      %1334 = vmatpush2.bf16.msra.mxu0 %v1136
      %1335 = vmatprep.subr.bf16.mxu0 %v1134
      %1336 = vmatpush2.bf16.msra.mxu0 %v1133
      %1337 = vmatprep.subr.bf16.mxu0 %v1106
      %1338 = vmatpush2.bf16.msra.mxu0 %v1105
      %1339 = vmatprep.subr.bf16.mxu0 %v1103
      %1340 = vmatpush2.bf16.msra.mxu0 %v1102
      %1341 = vmatprep.mubr.bf16.mxu0 %v1293
      %1342 = vmatmul.mubr.bf16.gmra.mxu0 %v1292
      %v1343 = vpop.f32.mrf.mxu0
      %v1344 = vadd.f32 %v1255, %v1343
      %v1345 = vpop.f32.mrf.mxu0
      %v1346 = vadd.f32 %v1255, %v1345
      %v1347 = vpop.f32.mrf.mxu0
      %v1348 = vadd.f32 %v1260, %v1347
      %v1349 = vpop.f32.mrf.mxu0
      %v1350 = vadd.f32 %v1260, %v1349
      %1351 = vmatprep.mubr.bf16.mxu0 %v1296
      %1352 = vmatmul.mubr.bf16.gmra.mxu0 %v1295
      %v1353 = vpop.f32.mrf.mxu0
      %v1354 = vadd.f32 %v1265, %v1353
      %v1355 = vpop.f32.mrf.mxu0
      %v1356 = vadd.f32 %v1265, %v1355
      %v1357 = vpop.f32.mrf.mxu0
      %v1358 = vadd.f32 %v1270, %v1357
      %v1359 = vpop.f32.mrf.mxu0
      %v1360 = vadd.f32 %v1270, %v1359
      %1361 = vdwg.mxu0
      %1362 = vmatprep.subr.bf16.mxu0 0
      %1363 = vmatpush1.bf16.msra.mxu0 0
      %1364 = vmatprep.subr.bf16.mxu0 0
      %1365 = vmatpush1.bf16.msra.mxu0 0
      %1366 = vmatprep.subr.bf16.mxu0 0
      %1367 = vmatpush1.bf16.msra.mxu0 0
      %1368 = vmatprep.subr.bf16.mxu0 0
      %1369 = vmatpush1.bf16.msra.mxu0 0
      %1370 = vmatprep.subr.bf16.mxu0 0
      %1371 = vmatpush1.bf16.msra.mxu0 0
      %1372 = vmatprep.subr.bf16.mxu0 0
      %1373 = vmatpush1.bf16.msra.mxu0 0
      %1374 = vmatprep.subr.bf16.mxu0 %v1230
      %1375 = vmatpush1.bf16.msra.mxu0 %v1229
      %1376 = vmatprep.subr.bf16.mxu0 %v1227
      %1377 = vmatpush1.bf16.msra.mxu0 %v1226
      %1378 = vmatprep.subr.bf16.mxu0 0
      %1379 = vmatpush2.bf16.msra.mxu0 0
      %1380 = vmatprep.subr.bf16.mxu0 0
      %1381 = vmatpush2.bf16.msra.mxu0 0
      %1382 = vmatprep.subr.bf16.mxu0 0
      %1383 = vmatpush2.bf16.msra.mxu0 0
      %1384 = vmatprep.subr.bf16.mxu0 0
      %1385 = vmatpush2.bf16.msra.mxu0 0
      %1386 = vmatprep.subr.bf16.mxu0 0
      %1387 = vmatpush2.bf16.msra.mxu0 0
      %1388 = vmatprep.subr.bf16.mxu0 0
      %1389 = vmatpush2.bf16.msra.mxu0 0
      %1390 = vmatprep.subr.bf16.mxu0 0
      %1391 = vmatpush2.bf16.msra.mxu0 0
      %1392 = vmatprep.subr.bf16.mxu0 0
      %1393 = vmatpush2.bf16.msra.mxu0 0
      %1394 = vmatprep.mubr.bf16.mxu0 0
      %1395 = vmatmul.mubr.bf16.gmra.mxu0 %v1304
      %v1396 = vpop.f32.mrf.mxu0
      %v1397 = vadd.f32 %v1344, %v1396
      %v1398 = vpop.f32.mrf.mxu0
      %v1399 = vadd.f32 %v1346, %v1398
      %v1400 = vpop.f32.mrf.mxu0
      %v1401 = vadd.f32 %v1348, %v1400
      %v1402 = vpop.f32.mrf.mxu0
      %v1403 = vadd.f32 %v1350, %v1402
      %1404 = vmatprep.mubr.bf16.mxu0 0
      %1405 = vmatmul.mubr.bf16.gmra.mxu0 %v1307
      %v1406 = vpop.f32.mrf.mxu0
      %v1407 = vadd.f32 %v1354, %v1406
      %v1408 = vpop.f32.mrf.mxu0
      %v1409 = vadd.f32 %v1356, %v1408
      %v1410 = vpop.f32.mrf.mxu0
      %v1411 = vadd.f32 %v1358, %v1410
      %v1412 = vpop.f32.mrf.mxu0
      %v1413 = vadd.f32 %v1360, %v1412
      %1414 = vdwg.mxu0
      %1415 = vmatprep.subr.bf16.mxu0 %v1069
      %1416 = vmatpush1.bf16.msra.mxu0 %v1076
      %1417 = vmatprep.subr.bf16.mxu0 %v1061
      %1418 = vmatpush1.bf16.msra.mxu0 %v1073
      %1419 = vmatprep.subr.bf16.mxu0 %v1038
      %1420 = vmatpush1.bf16.msra.mxu0 %v1045
      %1421 = vmatprep.subr.bf16.mxu0 %v1030
      %1422 = vmatpush1.bf16.msra.mxu0 %v1042
      %1423 = vmatprep.subr.bf16.mxu0 %v1007
      %1424 = vmatpush1.bf16.msra.mxu0 %v1014
      %1425 = vmatprep.subr.bf16.mxu0 %v999
      %1426 = vmatpush1.bf16.msra.mxu0 %v1011
      %1427 = vmatprep.subr.bf16.mxu0 %v983
      %1428 = vmatpush1.bf16.msra.mxu0 %v982
      %1429 = vmatprep.subr.bf16.mxu0 %v979
      %1430 = vmatpush1.bf16.msra.mxu0 %v978
      %1431 = vmatprep.subr.bf16.mxu0 %v1193
      %1432 = vmatpush2.bf16.msra.mxu0 %v1200
      %1433 = vmatprep.subr.bf16.mxu0 %v1185
      %1434 = vmatpush2.bf16.msra.mxu0 %v1197
      %1435 = vmatprep.subr.bf16.mxu0 %v1162
      %1436 = vmatpush2.bf16.msra.mxu0 %v1169
      %1437 = vmatprep.subr.bf16.mxu0 %v1154
      %1438 = vmatpush2.bf16.msra.mxu0 %v1166
      %1439 = vmatprep.subr.bf16.mxu0 %v1131
      %1440 = vmatpush2.bf16.msra.mxu0 %v1138
      %1441 = vmatprep.subr.bf16.mxu0 %v1123
      %1442 = vmatpush2.bf16.msra.mxu0 %v1135
      %1443 = vmatprep.subr.bf16.mxu0 %v1100
      %1444 = vmatpush2.bf16.msra.mxu0 %v1107
      %1445 = vmatprep.subr.bf16.mxu0 %v1092
      %1446 = vmatpush2.bf16.msra.mxu0 %v1104
      %1447 = vmatprep.mubr.bf16.mxu0 %v1293
      %1448 = vmatmul.mubr.bf16.gmra.mxu0 %v1292
      %v1449 = vpop.f32.mrf.mxu0
      %v1450 = vadd.f32 %v1255, %v1449
      %v1451 = vpop.f32.mrf.mxu0
      %v1452 = vadd.f32 %v1255, %v1451
      %v1453 = vpop.f32.mrf.mxu0
      %v1454 = vadd.f32 %v1260, %v1453
      %v1455 = vpop.f32.mrf.mxu0
      %v1456 = vadd.f32 %v1260, %v1455
      %1457 = vmatprep.mubr.bf16.mxu0 %v1296
      %1458 = vmatmul.mubr.bf16.gmra.mxu0 %v1295
      %v1459 = vpop.f32.mrf.mxu0
      %v1460 = vadd.f32 %v1265, %v1459
      %v1461 = vpop.f32.mrf.mxu0
      %v1462 = vadd.f32 %v1265, %v1461
      %v1463 = vpop.f32.mrf.mxu0
      %v1464 = vadd.f32 %v1270, %v1463
      %v1465 = vpop.f32.mrf.mxu0
      %v1466 = vadd.f32 %v1270, %v1465
      %1467 = vdwg.mxu0
      %1468 = vmatprep.subr.bf16.mxu0 0
      %1469 = vmatpush1.bf16.msra.mxu0 0
      %1470 = vmatprep.subr.bf16.mxu0 0
      %1471 = vmatpush1.bf16.msra.mxu0 0
      %1472 = vmatprep.subr.bf16.mxu0 0
      %1473 = vmatpush1.bf16.msra.mxu0 0
      %1474 = vmatprep.subr.bf16.mxu0 0
      %1475 = vmatpush1.bf16.msra.mxu0 0
      %1476 = vmatprep.subr.bf16.mxu0 0
      %1477 = vmatpush1.bf16.msra.mxu0 0
      %1478 = vmatprep.subr.bf16.mxu0 0
      %1479 = vmatpush1.bf16.msra.mxu0 0
      %1480 = vmatprep.subr.bf16.mxu0 %v1224
      %1481 = vmatpush1.bf16.msra.mxu0 %v1231
      %1482 = vmatprep.subr.bf16.mxu0 %v1216
      %1483 = vmatpush1.bf16.msra.mxu0 %v1228
      %1484 = vmatprep.subr.bf16.mxu0 0
      %1485 = vmatpush2.bf16.msra.mxu0 0
      %1486 = vmatprep.subr.bf16.mxu0 0
      %1487 = vmatpush2.bf16.msra.mxu0 0
      %1488 = vmatprep.subr.bf16.mxu0 0
      %1489 = vmatpush2.bf16.msra.mxu0 0
      %1490 = vmatprep.subr.bf16.mxu0 0
      %1491 = vmatpush2.bf16.msra.mxu0 0
      %1492 = vmatprep.subr.bf16.mxu0 0
      %1493 = vmatpush2.bf16.msra.mxu0 0
      %1494 = vmatprep.subr.bf16.mxu0 0
      %1495 = vmatpush2.bf16.msra.mxu0 0
      %1496 = vmatprep.subr.bf16.mxu0 0
      %1497 = vmatpush2.bf16.msra.mxu0 0
      %1498 = vmatprep.subr.bf16.mxu0 0
      %1499 = vmatpush2.bf16.msra.mxu0 0
      %1500 = vmatprep.mubr.bf16.mxu0 0
      %1501 = vmatmul.mubr.bf16.gmra.mxu0 %v1304
      %v1502 = vpop.f32.mrf.mxu0
      %v1503 = vadd.f32 %v1450, %v1502
      %v1504 = vpop.f32.mrf.mxu0
      %v1505 = vadd.f32 %v1452, %v1504
      %v1506 = vpop.f32.mrf.mxu0
      %v1507 = vadd.f32 %v1454, %v1506
      %v1508 = vpop.f32.mrf.mxu0
      %v1509 = vadd.f32 %v1456, %v1508
      %1510 = vmatprep.mubr.bf16.mxu0 0
      %1511 = vmatmul.mubr.bf16.gmra.mxu0 %v1307
      %v1512 = vpop.f32.mrf.mxu0
      %v1513 = vadd.f32 %v1460, %v1512
      %v1514 = vpop.f32.mrf.mxu0
      %v1515 = vadd.f32 %v1462, %v1514
      %v1516 = vpop.f32.mrf.mxu0
      %v1517 = vadd.f32 %v1464, %v1516
      %v1518 = vpop.f32.mrf.mxu0
      %v1519 = vadd.f32 %v1466, %v1518
      %1520 = vdwg.mxu0
      %v1521 = vand.u32 2147483647, %v1397
      %v1522 = vand.u32 2147483647, %v1399
      %v1523 = vand.u32 2147483647, %v1503
      %v1524 = vand.u32 2147483647, %v1505
      %v1525 = vand.u32 2147483647, %v1401
      %v1526 = vand.u32 2147483647, %v1403
      %v1527 = vand.u32 2147483647, %v1507
      %v1528 = vand.u32 2147483647, %v1509
      %v1529 = vand.u32 2147483647, %v1407
      %v1530 = vand.u32 2147483647, %v1409
      %v1531 = vand.u32 2147483647, %v1513
      %v1532 = vand.u32 2147483647, %v1515
      %v1533 = vand.u32 2147483647, %v1411
      %v1534 = vand.u32 2147483647, %v1413
      %v1535 = vand.u32 2147483647, %v1517
      %v1536 = vand.u32 2147483647, %v1519
      %v1537 = vsub.f32 0.0, %v1521
      %v1538 = vsub.f32 0.0, %v1522
      %v1539 = vsub.f32 0.0, %v1523
      %v1540 = vsub.f32 0.0, %v1524
      %v1541 = vsub.f32 0.0, %v1525
      %v1542 = vsub.f32 0.0, %v1526
      %v1543 = vsub.f32 0.0, %v1527
      %v1544 = vsub.f32 0.0, %v1528
      %v1545 = vsub.f32 0.0, %v1529
      %v1546 = vsub.f32 0.0, %v1530
      %v1547 = vsub.f32 0.0, %v1531
      %v1548 = vsub.f32 0.0, %v1532
      %v1549 = vsub.f32 0.0, %v1533
      %v1550 = vsub.f32 0.0, %v1534
      %v1551 = vsub.f32 0.0, %v1535
      %v1552 = vsub.f32 0.0, %v1536
      %v1553 = vmul.f32 %v1537, 1.442695
      %v1554 = vpow.pop %v1553
      %v1555 = vmul.f32 %v1538, 1.442695
      %v1556 = vpow.pop %v1555
      %v1557 = vmul.f32 %v1539, 1.442695
      %v1558 = vpow.pop %v1557
      %v1559 = vmul.f32 %v1540, 1.442695
      %v1560 = vpow.pop %v1559
      %v1561 = vmul.f32 %v1541, 1.442695
      %v1562 = vpow.pop %v1561
      %v1563 = vmul.f32 %v1542, 1.442695
      %v1564 = vpow.pop %v1563
      %v1565 = vmul.f32 %v1543, 1.442695
      %v1566 = vpow.pop %v1565
      %v1567 = vmul.f32 %v1544, 1.442695
      %v1568 = vpow.pop %v1567
      %v1569 = vmul.f32 %v1545, 1.442695
      %v1570 = vpow.pop %v1569
      %v1571 = vmul.f32 %v1546, 1.442695
      %v1572 = vpow.pop %v1571
      %v1573 = vmul.f32 %v1547, 1.442695
      %v1574 = vpow.pop %v1573
      %v1575 = vmul.f32 %v1548, 1.442695
      %v1576 = vpow.pop %v1575
      %v1577 = vmul.f32 %v1549, 1.442695
      %v1578 = vpow.pop %v1577
      %v1579 = vmul.f32 %v1550, 1.442695
      %v1580 = vpow.pop %v1579
      %v1581 = vmul.f32 %v1551, 1.442695
      %v1582 = vpow.pop %v1581
      %v1583 = vmul.f32 %v1552, 1.442695
      %v1584 = vpow.pop %v1583
      %v1585 = vadd.f32 %v1554, 1.0
      %v1586 = vadd.f32 %v1556, 1.0
      %v1587 = vadd.f32 %v1558, 1.0
      %v1588 = vadd.f32 %v1560, 1.0
      %v1589 = vadd.f32 %v1562, 1.0
      %v1590 = vadd.f32 %v1564, 1.0
      %v1591 = vadd.f32 %v1566, 1.0
      %v1592 = vadd.f32 %v1568, 1.0
      %v1593 = vadd.f32 %v1570, 1.0
      %v1594 = vadd.f32 %v1572, 1.0
      %v1595 = vadd.f32 %v1574, 1.0
      %v1596 = vadd.f32 %v1576, 1.0
      %v1597 = vadd.f32 %v1578, 1.0
      %v1598 = vadd.f32 %v1580, 1.0
      %v1599 = vadd.f32 %v1582, 1.0
      %v1600 = vadd.f32 %v1584, 1.0
      %v1601 = vrcp.pop %v1585
      %v1602 = vrcp.pop %v1586
      %v1603 = vrcp.pop %v1587
      %v1604 = vrcp.pop %v1588
      %v1605 = vrcp.pop %v1589
      %v1606 = vrcp.pop %v1590
      %v1607 = vrcp.pop %v1591
      %v1608 = vrcp.pop %v1592
      %v1609 = vrcp.pop %v1593
      %v1610 = vrcp.pop %v1594
      %v1611 = vrcp.pop %v1595
      %v1612 = vrcp.pop %v1596
      %v1613 = vrcp.pop %v1597
      %v1614 = vrcp.pop %v1598
      %v1615 = vrcp.pop %v1599
      %v1616 = vrcp.pop %v1600
      %vm1617 = vcmp.ge.f32.partialorder %v1397, 0.0
      %vm1618 = vcmp.ge.f32.partialorder %v1399, 0.0
      %vm1619 = vcmp.ge.f32.partialorder %v1503, 0.0
      %vm1620 = vcmp.ge.f32.partialorder %v1505, 0.0
      %vm1621 = vcmp.ge.f32.partialorder %v1401, 0.0
      %vm1622 = vcmp.ge.f32.partialorder %v1403, 0.0
      %vm1623 = vcmp.ge.f32.partialorder %v1507, 0.0
      %vm1624 = vcmp.ge.f32.partialorder %v1509, 0.0
      %vm1625 = vcmp.ge.f32.partialorder %v1407, 0.0
      %vm1626 = vcmp.ge.f32.partialorder %v1409, 0.0
      %vm1627 = vcmp.ge.f32.partialorder %v1513, 0.0
      %vm1628 = vcmp.ge.f32.partialorder %v1515, 0.0
      %vm1629 = vcmp.ge.f32.partialorder %v1411, 0.0
      %vm1630 = vcmp.ge.f32.partialorder %v1413, 0.0
      %vm1631 = vcmp.ge.f32.partialorder %v1517, 0.0
      %vm1632 = vcmp.ge.f32.partialorder %v1519, 0.0
      %v1633 = vmul.f32 %v1554, %v1601
      %v1634 = vmul.f32 %v1556, %v1602
      %v1635 = vmul.f32 %v1558, %v1603
      %v1636 = vmul.f32 %v1560, %v1604
      %v1637 = vmul.f32 %v1562, %v1605
      %v1638 = vmul.f32 %v1564, %v1606
      %v1639 = vmul.f32 %v1566, %v1607
      %v1640 = vmul.f32 %v1568, %v1608
      %v1641 = vmul.f32 %v1570, %v1609
      %v1642 = vmul.f32 %v1572, %v1610
      %v1643 = vmul.f32 %v1574, %v1611
      %v1644 = vmul.f32 %v1576, %v1612
      %v1645 = vmul.f32 %v1578, %v1613
      %v1646 = vmul.f32 %v1580, %v1614
      %v1647 = vmul.f32 %v1582, %v1615
      %v1648 = vmul.f32 %v1584, %v1616
      %v1649 = vsel %vm1617, %v1601, %v1633
      %v1650 = vsel %vm1618, %v1602, %v1634
      %v1651 = vsel %vm1619, %v1603, %v1635
      %v1652 = vsel %vm1620, %v1604, %v1636
      %v1653 = vsel %vm1621, %v1605, %v1637
      %v1654 = vsel %vm1622, %v1606, %v1638
      %v1655 = vsel %vm1623, %v1607, %v1639
      %v1656 = vsel %vm1624, %v1608, %v1640
      %v1657 = vsel %vm1625, %v1609, %v1641
      %v1658 = vsel %vm1626, %v1610, %v1642
      %v1659 = vsel %vm1627, %v1611, %v1643
      %v1660 = vsel %vm1628, %v1612, %v1644
      %v1661 = vsel %vm1629, %v1613, %v1645
      %v1662 = vsel %vm1630, %v1614, %v1646
      %v1663 = vsel %vm1631, %v1615, %v1647
      %v1664 = vsel %vm1632, %v1616, %v1648
      %1665 = vrot.lane.b32.xlu0 %v877, 90
      %v1666 = vpop.permute.xlu0 %1665
      %1667 = vrot.lane.b32.xlu0 %v881, 90
      %v1668 = vpop.permute.xlu0 %1667
      %1669 = vrot.lane.b32.xlu0 %v885, 90
      %v1670 = vpop.permute.xlu0 %1669
      %1671 = vrot.lane.b32.xlu0 %v889, 90
      %v1672 = vpop.permute.xlu0 %1671
      %v1673 = vsel %vm510, %v1666, %v1668
      %v1674 = vsel %vm510, %v1668, %v1670
      %v1675 = vsel %vm510, %v1670, %v1672
      %v1680 = vmul.f32 %v1649, %v1673
      %v1681 = vmul.f32 %v1650, %v1674
      %v1682 = vmul.f32 %v1651, %v1675
      %v1683 = vmul.f32 %v1652, %v1672
      %v1684 = vmul.f32 %v1653, %v1673
      %v1685 = vmul.f32 %v1654, %v1674
      %v1686 = vmul.f32 %v1655, %v1675
      %v1687 = vmul.f32 %v1656, %v1672
      %v1688 = vmul.f32 %v1657, %v1673
      %v1689 = vmul.f32 %v1658, %v1674
      %v1690 = vmul.f32 %v1659, %v1675
      %v1691 = vmul.f32 %v1660, %v1672
      %v1692 = vmul.f32 %v1661, %v1673
      %v1693 = vmul.f32 %v1662, %v1674
      %v1694 = vmul.f32 %v1663, %v1675
      %v1695 = vmul.f32 %v1664, %v1672
      %v1696 = vpack.c.bf16 %v1684, %v1680
      %v1697 = vpack.c.bf16 %v1685, %v1681
      %v1698 = vpack.c.bf16 %v1686, %v1682
      %v1699 = vpack.c.bf16 %v1687, %v1683
      %v1700 = vpack.c.bf16 %v1692, %v1688
      %v1701 = vpack.c.bf16 %v1693, %v1689
      %v1702 = vpack.c.bf16 %v1694, %v1690
      %v1703 = vpack.c.bf16 %v1695, %v1691
      %1712 = vrot.lane.b32.xlu0 %v1696, 127
      %v1713 = vpop.permute.xlu0 %1712
      %1714 = vrot.lane.b32.xlu0 %v1697, 127
      %v1715 = vpop.permute.xlu0 %1714
      %1716 = vrot.lane.b32.xlu0 %v1698, 127
      %v1717 = vpop.permute.xlu0 %1716
      %1718 = vrot.lane.b32.xlu0 %v1699, 127
      %v1719 = vpop.permute.xlu0 %1718
      %1720 = vrot.lane.b32.xlu0 %v1700, 127
      %v1721 = vpop.permute.xlu0 %1720
      %1722 = vrot.lane.b32.xlu0 %v1701, 127
      %v1723 = vpop.permute.xlu0 %1722
      %1724 = vrot.lane.b32.xlu0 %v1702, 127
      %v1725 = vpop.permute.xlu0 %1724
      %1726 = vrot.lane.b32.xlu0 %v1703, 127
      %v1727 = vpop.permute.xlu0 %1726
      %v1728 = vsel %vm1008, %v1713, %v1715
      %v1729 = vsel %vm1008, %v1715, %v1717
      %v1730 = vsel %vm1008, %v1717, %v1719
      %v1731 = vsel %vm1008, %v1721, %v1723
      %v1732 = vsel %vm1008, %v1723, %v1725
      %v1733 = vsel %vm1008, %v1725, %v1727
      %1742 = vrot.lane.b32.xlu0 %v1696, 126
      %v1743 = vpop.permute.xlu0 %1742
      %1744 = vrot.lane.b32.xlu0 %v1697, 126
      %v1745 = vpop.permute.xlu0 %1744
      %1746 = vrot.lane.b32.xlu0 %v1698, 126
      %v1747 = vpop.permute.xlu0 %1746
      %1748 = vrot.lane.b32.xlu0 %v1699, 126
      %v1749 = vpop.permute.xlu0 %1748
      %1750 = vrot.lane.b32.xlu0 %v1700, 126
      %v1751 = vpop.permute.xlu0 %1750
      %1752 = vrot.lane.b32.xlu0 %v1701, 126
      %v1753 = vpop.permute.xlu0 %1752
      %1754 = vrot.lane.b32.xlu0 %v1702, 126
      %v1755 = vpop.permute.xlu0 %1754
      %1756 = vrot.lane.b32.xlu0 %v1703, 126
      %v1757 = vpop.permute.xlu0 %1756
      %v1758 = vsel %vm1039, %v1743, %v1745
      %v1759 = vsel %vm1039, %v1745, %v1747
      %v1760 = vsel %vm1039, %v1747, %v1749
      %v1761 = vsel %vm1039, %v1751, %v1753
      %v1762 = vsel %vm1039, %v1753, %v1755
      %v1763 = vsel %vm1039, %v1755, %v1757
      %1772 = vrot.lane.b32.xlu0 %v1696, 110
      %v1773 = vpop.permute.xlu0 %1772
      %1774 = vrot.lane.b32.xlu0 %v1697, 110
      %v1775 = vpop.permute.xlu0 %1774
      %1776 = vrot.lane.b32.xlu0 %v1698, 110
      %v1777 = vpop.permute.xlu0 %1776
      %1778 = vrot.lane.b32.xlu0 %v1699, 110
      %v1779 = vpop.permute.xlu0 %1778
      %1780 = vrot.lane.b32.xlu0 %v1700, 110
      %v1781 = vpop.permute.xlu0 %1780
      %1782 = vrot.lane.b32.xlu0 %v1701, 110
      %v1783 = vpop.permute.xlu0 %1782
      %1784 = vrot.lane.b32.xlu0 %v1702, 110
      %v1785 = vpop.permute.xlu0 %1784
      %1786 = vrot.lane.b32.xlu0 %v1703, 110
      %v1787 = vpop.permute.xlu0 %1786
      %v1788 = vsel %vm1070, %v1773, %v1775
      %v1789 = vsel %vm1070, %v1775, %v1777
      %v1790 = vsel %vm1070, %v1777, %v1779
      %v1791 = vsel %vm1070, %v1781, %v1783
      %v1792 = vsel %vm1070, %v1783, %v1785
      %v1793 = vsel %vm1070, %v1785, %v1787
      %1802 = vrot.lane.b32.xlu0 %v1696, 109
      %v1803 = vpop.permute.xlu0 %1802
      %1804 = vrot.lane.b32.xlu0 %v1697, 109
      %v1805 = vpop.permute.xlu0 %1804
      %1806 = vrot.lane.b32.xlu0 %v1698, 109
      %v1807 = vpop.permute.xlu0 %1806
      %1808 = vrot.lane.b32.xlu0 %v1699, 109
      %v1809 = vpop.permute.xlu0 %1808
      %1810 = vrot.lane.b32.xlu0 %v1700, 109
      %v1811 = vpop.permute.xlu0 %1810
      %1812 = vrot.lane.b32.xlu0 %v1701, 109
      %v1813 = vpop.permute.xlu0 %1812
      %1814 = vrot.lane.b32.xlu0 %v1702, 109
      %v1815 = vpop.permute.xlu0 %1814
      %1816 = vrot.lane.b32.xlu0 %v1703, 109
      %v1817 = vpop.permute.xlu0 %1816
      %v1818 = vsel %vm1101, %v1803, %v1805
      %v1819 = vsel %vm1101, %v1805, %v1807
      %v1820 = vsel %vm1101, %v1807, %v1809
      %v1821 = vsel %vm1101, %v1811, %v1813
      %v1822 = vsel %vm1101, %v1813, %v1815
      %v1823 = vsel %vm1101, %v1815, %v1817
      %1832 = vrot.lane.b32.xlu0 %v1696, 108
      %v1833 = vpop.permute.xlu0 %1832
      %1834 = vrot.lane.b32.xlu0 %v1697, 108
      %v1835 = vpop.permute.xlu0 %1834
      %1836 = vrot.lane.b32.xlu0 %v1698, 108
      %v1837 = vpop.permute.xlu0 %1836
      %1838 = vrot.lane.b32.xlu0 %v1699, 108
      %v1839 = vpop.permute.xlu0 %1838
      %1840 = vrot.lane.b32.xlu0 %v1700, 108
      %v1841 = vpop.permute.xlu0 %1840
      %1842 = vrot.lane.b32.xlu0 %v1701, 108
      %v1843 = vpop.permute.xlu0 %1842
      %1844 = vrot.lane.b32.xlu0 %v1702, 108
      %v1845 = vpop.permute.xlu0 %1844
      %1846 = vrot.lane.b32.xlu0 %v1703, 108
      %v1847 = vpop.permute.xlu0 %1846
      %v1848 = vsel %vm1132, %v1833, %v1835
      %v1849 = vsel %vm1132, %v1835, %v1837
      %v1850 = vsel %vm1132, %v1837, %v1839
      %v1851 = vsel %vm1132, %v1841, %v1843
      %v1852 = vsel %vm1132, %v1843, %v1845
      %v1853 = vsel %vm1132, %v1845, %v1847
      %1862 = vrot.lane.b32.xlu0 %v1696, 92
      %v1863 = vpop.permute.xlu0 %1862
      %1864 = vrot.lane.b32.xlu0 %v1697, 92
      %v1865 = vpop.permute.xlu0 %1864
      %1866 = vrot.lane.b32.xlu0 %v1698, 92
      %v1867 = vpop.permute.xlu0 %1866
      %1868 = vrot.lane.b32.xlu0 %v1699, 92
      %v1869 = vpop.permute.xlu0 %1868
      %1870 = vrot.lane.b32.xlu0 %v1700, 92
      %v1871 = vpop.permute.xlu0 %1870
      %1872 = vrot.lane.b32.xlu0 %v1701, 92
      %v1873 = vpop.permute.xlu0 %1872
      %1874 = vrot.lane.b32.xlu0 %v1702, 92
      %v1875 = vpop.permute.xlu0 %1874
      %1876 = vrot.lane.b32.xlu0 %v1703, 92
      %v1877 = vpop.permute.xlu0 %1876
      %v1878 = vsel %vm1163, %v1863, %v1865
      %v1879 = vsel %vm1163, %v1865, %v1867
      %v1880 = vsel %vm1163, %v1867, %v1869
      %v1881 = vsel %vm1163, %v1871, %v1873
      %v1882 = vsel %vm1163, %v1873, %v1875
      %v1883 = vsel %vm1163, %v1875, %v1877
      %1892 = vrot.lane.b32.xlu0 %v1696, 91
      %v1893 = vpop.permute.xlu0 %1892
      %1894 = vrot.lane.b32.xlu0 %v1697, 91
      %v1895 = vpop.permute.xlu0 %1894
      %1896 = vrot.lane.b32.xlu0 %v1698, 91
      %v1897 = vpop.permute.xlu0 %1896
      %1898 = vrot.lane.b32.xlu0 %v1699, 91
      %v1899 = vpop.permute.xlu0 %1898
      %1900 = vrot.lane.b32.xlu0 %v1700, 91
      %v1901 = vpop.permute.xlu0 %1900
      %1902 = vrot.lane.b32.xlu0 %v1701, 91
      %v1903 = vpop.permute.xlu0 %1902
      %1904 = vrot.lane.b32.xlu0 %v1702, 91
      %v1905 = vpop.permute.xlu0 %1904
      %1906 = vrot.lane.b32.xlu0 %v1703, 91
      %v1907 = vpop.permute.xlu0 %1906
      %v1908 = vsel %vm1194, %v1893, %v1895
      %v1909 = vsel %vm1194, %v1895, %v1897
      %v1910 = vsel %vm1194, %v1897, %v1899
      %v1911 = vsel %vm1194, %v1901, %v1903
      %v1912 = vsel %vm1194, %v1903, %v1905
      %v1913 = vsel %vm1194, %v1905, %v1907
      %1922 = vrot.lane.b32.xlu0 %v1696, 90
      %v1923 = vpop.permute.xlu0 %1922
      %1924 = vrot.lane.b32.xlu0 %v1697, 90
      %v1925 = vpop.permute.xlu0 %1924
      %1926 = vrot.lane.b32.xlu0 %v1698, 90
      %v1927 = vpop.permute.xlu0 %1926
      %1928 = vrot.lane.b32.xlu0 %v1699, 90
      %v1929 = vpop.permute.xlu0 %1928
      %1930 = vrot.lane.b32.xlu0 %v1700, 90
      %v1931 = vpop.permute.xlu0 %1930
      %1932 = vrot.lane.b32.xlu0 %v1701, 90
      %v1933 = vpop.permute.xlu0 %1932
      %1934 = vrot.lane.b32.xlu0 %v1702, 90
      %v1935 = vpop.permute.xlu0 %1934
      %1936 = vrot.lane.b32.xlu0 %v1703, 90
      %v1937 = vpop.permute.xlu0 %1936
      %v1938 = vsel %vm1225, %v1923, %v1925
      %v1939 = vsel %vm1225, %v1925, %v1927
      %v1940 = vsel %vm1225, %v1927, %v1929
      %v1941 = vsel %vm1225, %v1931, %v1933
      %v1942 = vsel %vm1225, %v1933, %v1935
      %v1943 = vsel %vm1225, %v1935, %v1937
      %v1952 = vld [vmem:[%s7] sm:$0xff]
      %v1953 = vld [vmem:[%s7 + $0x8] sm:$0xf]
      %v1954 = vld [vmem:[%s7 + $0xc] sm:$0xff]
      %v1955 = vld [vmem:[%s7 + $0x14] sm:$0xf]
      %v1956 = vld [vmem:[%s7 + $0x18] sm:$0xff]
      %v1957 = vld [vmem:[%s7 + $0x20] sm:$0xf]
      %v1958 = vld [vmem:[%s7 + $0x24] sm:$0xff]
      %v1959 = vld [vmem:[%s7 + $0x2c] sm:$0xf]
      %v1968 = vunpack.c.l.b16 %v1952
      %v1969 = vunpack.c.h.b16 %v1952
      %v1970 = vunpack.c.l.b16 %v1953
      %v1971 = vunpack.c.l.b16 %v1954
      %v1972 = vunpack.c.h.b16 %v1954
      %v1973 = vunpack.c.l.b16 %v1955
      %v1974 = vunpack.c.l.b16 %v1956
      %v1975 = vunpack.c.h.b16 %v1956
      %v1976 = vunpack.c.l.b16 %v1957
      %v1977 = vunpack.c.l.b16 %v1958
      %v1978 = vunpack.c.h.b16 %v1958
      %v1979 = vunpack.c.l.b16 %v1959
      %v1980 = vpack.c.b16 %v1971, %v1968
      %v1981 = vpack.c.b16 %v1972, %v1969
      %v1982 = vpack.c.b16 %v1973, %v1970
      %v1983 = vpack.c.b16 %v1977, %v1974
      %v1984 = vpack.c.b16 %v1978, %v1975
      %v1985 = vpack.c.b16 %v1979, %v1976
      %v1991 = vsel %vm1302, %v1982, 0
      %v1994 = vsel %vm1302, %v1985, 0
      %1996 = vmatprep.subr.bf16.mxu0 %v1792
      %1997 = vmatpush1.bf16.msra.mxu0 %v1791
      %1998 = vmatprep.subr.bf16.mxu0 %v1789
      %1999 = vmatpush1.bf16.msra.mxu0 %v1788
      %2000 = vmatprep.subr.bf16.mxu0 %v1762
      %2001 = vmatpush1.bf16.msra.mxu0 %v1761
      %2002 = vmatprep.subr.bf16.mxu0 %v1759
      %2003 = vmatpush1.bf16.msra.mxu0 %v1758
      %2004 = vmatprep.subr.bf16.mxu0 %v1732
      %2005 = vmatpush1.bf16.msra.mxu0 %v1731
      %2006 = vmatprep.subr.bf16.mxu0 %v1729
      %2007 = vmatpush1.bf16.msra.mxu0 %v1728
      %2008 = vmatprep.subr.bf16.mxu0 %v1701
      %2009 = vmatpush1.bf16.msra.mxu0 %v1700
      %2010 = vmatprep.subr.bf16.mxu0 %v1697
      %2011 = vmatpush1.bf16.msra.mxu0 %v1696
      %2012 = vmatprep.subr.bf16.mxu0 %v1912
      %2013 = vmatpush2.bf16.msra.mxu0 %v1911
      %2014 = vmatprep.subr.bf16.mxu0 %v1909
      %2015 = vmatpush2.bf16.msra.mxu0 %v1908
      %2016 = vmatprep.subr.bf16.mxu0 %v1882
      %2017 = vmatpush2.bf16.msra.mxu0 %v1881
      %2018 = vmatprep.subr.bf16.mxu0 %v1879
      %2019 = vmatpush2.bf16.msra.mxu0 %v1878
      %2020 = vmatprep.subr.bf16.mxu0 %v1852
      %2021 = vmatpush2.bf16.msra.mxu0 %v1851
      %2022 = vmatprep.subr.bf16.mxu0 %v1849
      %2023 = vmatpush2.bf16.msra.mxu0 %v1848
      %2024 = vmatprep.subr.bf16.mxu0 %v1822
      %2025 = vmatpush2.bf16.msra.mxu0 %v1821
      %2026 = vmatprep.subr.bf16.mxu0 %v1819
      %2027 = vmatpush2.bf16.msra.mxu0 %v1818
      %2028 = vmatprep.mubr.bf16.mxu0 %v1981
      %2029 = vmatmul.mubr.bf16.gmra.mxu0 %v1980
      %v2030 = vpop.f32.mrf.mxu0
      %v2031 = vadd.f32 0.0, %v2030
      %v2032 = vpop.f32.mrf.mxu0
      %v2033 = vadd.f32 0.0, %v2032
      %v2034 = vpop.f32.mrf.mxu0
      %v2035 = vadd.f32 0.0, %v2034
      %v2036 = vpop.f32.mrf.mxu0
      %v2037 = vadd.f32 0.0, %v2036
      %2038 = vmatprep.mubr.bf16.mxu0 %v1984
      %2039 = vmatmul.mubr.bf16.gmra.mxu0 %v1983
      %v2040 = vpop.f32.mrf.mxu0
      %v2041 = vadd.f32 0.0, %v2040
      %v2042 = vpop.f32.mrf.mxu0
      %v2043 = vadd.f32 0.0, %v2042
      %v2044 = vpop.f32.mrf.mxu0
      %v2045 = vadd.f32 0.0, %v2044
      %v2046 = vpop.f32.mrf.mxu0
      %v2047 = vadd.f32 0.0, %v2046
      %2048 = vdwg.mxu0
      %2049 = vmatprep.subr.bf16.mxu0 0
      %2050 = vmatpush1.bf16.msra.mxu0 0
      %2051 = vmatprep.subr.bf16.mxu0 0
      %2052 = vmatpush1.bf16.msra.mxu0 0
      %2053 = vmatprep.subr.bf16.mxu0 0
      %2054 = vmatpush1.bf16.msra.mxu0 0
      %2055 = vmatprep.subr.bf16.mxu0 0
      %2056 = vmatpush1.bf16.msra.mxu0 0
      %2057 = vmatprep.subr.bf16.mxu0 0
      %2058 = vmatpush1.bf16.msra.mxu0 0
      %2059 = vmatprep.subr.bf16.mxu0 0
      %2060 = vmatpush1.bf16.msra.mxu0 0
      %2061 = vmatprep.subr.bf16.mxu0 %v1942
      %2062 = vmatpush1.bf16.msra.mxu0 %v1941
      %2063 = vmatprep.subr.bf16.mxu0 %v1939
      %2064 = vmatpush1.bf16.msra.mxu0 %v1938
      %2065 = vmatprep.subr.bf16.mxu0 0
      %2066 = vmatpush2.bf16.msra.mxu0 0
      %2067 = vmatprep.subr.bf16.mxu0 0
      %2068 = vmatpush2.bf16.msra.mxu0 0
      %2069 = vmatprep.subr.bf16.mxu0 0
      %2070 = vmatpush2.bf16.msra.mxu0 0
      %2071 = vmatprep.subr.bf16.mxu0 0
      %2072 = vmatpush2.bf16.msra.mxu0 0
      %2073 = vmatprep.subr.bf16.mxu0 0
      %2074 = vmatpush2.bf16.msra.mxu0 0
      %2075 = vmatprep.subr.bf16.mxu0 0
      %2076 = vmatpush2.bf16.msra.mxu0 0
      %2077 = vmatprep.subr.bf16.mxu0 0
      %2078 = vmatpush2.bf16.msra.mxu0 0
      %2079 = vmatprep.subr.bf16.mxu0 0
      %2080 = vmatpush2.bf16.msra.mxu0 0
      %2081 = vmatprep.mubr.bf16.mxu0 0
      %2082 = vmatmul.mubr.bf16.gmra.mxu0 %v1991
      %v2083 = vpop.f32.mrf.mxu0
      %v2084 = vadd.f32 %v2031, %v2083
      %v2085 = vpop.f32.mrf.mxu0
      %v2086 = vadd.f32 %v2033, %v2085
      %v2087 = vpop.f32.mrf.mxu0
      %v2088 = vadd.f32 %v2035, %v2087
      %v2089 = vpop.f32.mrf.mxu0
      %v2090 = vadd.f32 %v2037, %v2089
      %2091 = vmatprep.mubr.bf16.mxu0 0
      %2092 = vmatmul.mubr.bf16.gmra.mxu0 %v1994
      %v2093 = vpop.f32.mrf.mxu0
      %v2094 = vadd.f32 %v2041, %v2093
      %v2095 = vpop.f32.mrf.mxu0
      %v2096 = vadd.f32 %v2043, %v2095
      %v2097 = vpop.f32.mrf.mxu0
      %v2098 = vadd.f32 %v2045, %v2097
      %v2099 = vpop.f32.mrf.mxu0
      %v2100 = vadd.f32 %v2047, %v2099
      %2101 = vdwg.mxu0
      %2102 = vmatprep.subr.bf16.mxu0 %v1787
      %2103 = vmatpush1.bf16.msra.mxu0 %v1793
      %2104 = vmatprep.subr.bf16.mxu0 %v1779
      %2105 = vmatpush1.bf16.msra.mxu0 %v1790
      %2106 = vmatprep.subr.bf16.mxu0 %v1757
      %2107 = vmatpush1.bf16.msra.mxu0 %v1763
      %2108 = vmatprep.subr.bf16.mxu0 %v1749
      %2109 = vmatpush1.bf16.msra.mxu0 %v1760
      %2110 = vmatprep.subr.bf16.mxu0 %v1727
      %2111 = vmatpush1.bf16.msra.mxu0 %v1733
      %2112 = vmatprep.subr.bf16.mxu0 %v1719
      %2113 = vmatpush1.bf16.msra.mxu0 %v1730
      %2114 = vmatprep.subr.bf16.mxu0 %v1703
      %2115 = vmatpush1.bf16.msra.mxu0 %v1702
      %2116 = vmatprep.subr.bf16.mxu0 %v1699
      %2117 = vmatpush1.bf16.msra.mxu0 %v1698
      %2118 = vmatprep.subr.bf16.mxu0 %v1907
      %2119 = vmatpush2.bf16.msra.mxu0 %v1913
      %2120 = vmatprep.subr.bf16.mxu0 %v1899
      %2121 = vmatpush2.bf16.msra.mxu0 %v1910
      %2122 = vmatprep.subr.bf16.mxu0 %v1877
      %2123 = vmatpush2.bf16.msra.mxu0 %v1883
      %2124 = vmatprep.subr.bf16.mxu0 %v1869
      %2125 = vmatpush2.bf16.msra.mxu0 %v1880
      %2126 = vmatprep.subr.bf16.mxu0 %v1847
      %2127 = vmatpush2.bf16.msra.mxu0 %v1853
      %2128 = vmatprep.subr.bf16.mxu0 %v1839
      %2129 = vmatpush2.bf16.msra.mxu0 %v1850
      %2130 = vmatprep.subr.bf16.mxu0 %v1817
      %2131 = vmatpush2.bf16.msra.mxu0 %v1823
      %2132 = vmatprep.subr.bf16.mxu0 %v1809
      %2133 = vmatpush2.bf16.msra.mxu0 %v1820
      %2134 = vmatprep.mubr.bf16.mxu0 %v1981
      %2135 = vmatmul.mubr.bf16.gmra.mxu0 %v1980
      %v2136 = vpop.f32.mrf.mxu0
      %v2137 = vadd.f32 0.0, %v2136
      %v2138 = vpop.f32.mrf.mxu0
      %v2139 = vadd.f32 0.0, %v2138
      %v2140 = vpop.f32.mrf.mxu0
      %v2141 = vadd.f32 0.0, %v2140
      %v2142 = vpop.f32.mrf.mxu0
      %v2143 = vadd.f32 0.0, %v2142
      %2144 = vmatprep.mubr.bf16.mxu0 %v1984
      %2145 = vmatmul.mubr.bf16.gmra.mxu0 %v1983
      %v2146 = vpop.f32.mrf.mxu0
      %v2147 = vadd.f32 0.0, %v2146
      %v2148 = vpop.f32.mrf.mxu0
      %v2149 = vadd.f32 0.0, %v2148
      %v2150 = vpop.f32.mrf.mxu0
      %v2151 = vadd.f32 0.0, %v2150
      %v2152 = vpop.f32.mrf.mxu0
      %v2153 = vadd.f32 0.0, %v2152
      %2154 = vdwg.mxu0
      %2155 = vmatprep.subr.bf16.mxu0 0
      %2156 = vmatpush1.bf16.msra.mxu0 0
      %2157 = vmatprep.subr.bf16.mxu0 0
      %2158 = vmatpush1.bf16.msra.mxu0 0
      %2159 = vmatprep.subr.bf16.mxu0 0
      %2160 = vmatpush1.bf16.msra.mxu0 0
      %2161 = vmatprep.subr.bf16.mxu0 0
      %2162 = vmatpush1.bf16.msra.mxu0 0
      %2163 = vmatprep.subr.bf16.mxu0 0
      %2164 = vmatpush1.bf16.msra.mxu0 0
      %2165 = vmatprep.subr.bf16.mxu0 0
      %2166 = vmatpush1.bf16.msra.mxu0 0
      %2167 = vmatprep.subr.bf16.mxu0 %v1937
      %2168 = vmatpush1.bf16.msra.mxu0 %v1943
      %2169 = vmatprep.subr.bf16.mxu0 %v1929
      %2170 = vmatpush1.bf16.msra.mxu0 %v1940
      %2171 = vmatprep.subr.bf16.mxu0 0
      %2172 = vmatpush2.bf16.msra.mxu0 0
      %2173 = vmatprep.subr.bf16.mxu0 0
      %2174 = vmatpush2.bf16.msra.mxu0 0
      %2175 = vmatprep.subr.bf16.mxu0 0
      %2176 = vmatpush2.bf16.msra.mxu0 0
      %2177 = vmatprep.subr.bf16.mxu0 0
      %2178 = vmatpush2.bf16.msra.mxu0 0
      %2179 = vmatprep.subr.bf16.mxu0 0
      %2180 = vmatpush2.bf16.msra.mxu0 0
      %2181 = vmatprep.subr.bf16.mxu0 0
      %2182 = vmatpush2.bf16.msra.mxu0 0
      %2183 = vmatprep.subr.bf16.mxu0 0
      %2184 = vmatpush2.bf16.msra.mxu0 0
      %2185 = vmatprep.subr.bf16.mxu0 0
      %2186 = vmatpush2.bf16.msra.mxu0 0
      %2187 = vmatprep.mubr.bf16.mxu0 0
      %2188 = vmatmul.mubr.bf16.gmra.mxu0 %v1991
      %v2189 = vpop.f32.mrf.mxu0
      %v2190 = vadd.f32 %v2137, %v2189
      %v2191 = vpop.f32.mrf.mxu0
      %v2192 = vadd.f32 %v2139, %v2191
      %v2193 = vpop.f32.mrf.mxu0
      %v2194 = vadd.f32 %v2141, %v2193
      %v2195 = vpop.f32.mrf.mxu0
      %v2196 = vadd.f32 %v2143, %v2195
      %2197 = vmatprep.mubr.bf16.mxu0 0
      %2198 = vmatmul.mubr.bf16.gmra.mxu0 %v1994
      %v2199 = vpop.f32.mrf.mxu0
      %v2200 = vadd.f32 %v2147, %v2199
      %v2201 = vpop.f32.mrf.mxu0
      %v2202 = vadd.f32 %v2149, %v2201
      %v2203 = vpop.f32.mrf.mxu0
      %v2204 = vadd.f32 %v2151, %v2203
      %v2205 = vpop.f32.mrf.mxu0
      %v2206 = vadd.f32 %v2153, %v2205
      %2207 = vdwg.mxu0
      %2224 = vrot.lane.b32.xlu0 %v960, 90
      %v2225 = vpop.permute.xlu0 %2224
      %2226 = vrot.lane.b32.xlu0 %v961, 90
      %v2227 = vpop.permute.xlu0 %2226
      %2228 = vrot.lane.b32.xlu0 %v962, 90
      %v2229 = vpop.permute.xlu0 %2228
      %2230 = vrot.lane.b32.xlu0 %v963, 90
      %v2231 = vpop.permute.xlu0 %2230
      %2232 = vrot.lane.b32.xlu0 %v964, 90
      %v2233 = vpop.permute.xlu0 %2232
      %2234 = vrot.lane.b32.xlu0 %v965, 90
      %v2235 = vpop.permute.xlu0 %2234
      %2236 = vrot.lane.b32.xlu0 %v966, 90
      %v2237 = vpop.permute.xlu0 %2236
      %2238 = vrot.lane.b32.xlu0 %v967, 90
      %v2239 = vpop.permute.xlu0 %2238
      %2240 = vrot.lane.b32.xlu0 %v968, 90
      %v2241 = vpop.permute.xlu0 %2240
      %2242 = vrot.lane.b32.xlu0 %v969, 90
      %v2243 = vpop.permute.xlu0 %2242
      %2244 = vrot.lane.b32.xlu0 %v970, 90
      %v2245 = vpop.permute.xlu0 %2244
      %2246 = vrot.lane.b32.xlu0 %v971, 90
      %v2247 = vpop.permute.xlu0 %2246
      %2248 = vrot.lane.b32.xlu0 %v972, 90
      %v2249 = vpop.permute.xlu0 %2248
      %2250 = vrot.lane.b32.xlu0 %v973, 90
      %v2251 = vpop.permute.xlu0 %2250
      %2252 = vrot.lane.b32.xlu0 %v974, 90
      %v2253 = vpop.permute.xlu0 %2252
      %2254 = vrot.lane.b32.xlu0 %v975, 90
      %v2255 = vpop.permute.xlu0 %2254
      %v2256 = vsel %vm510, %v2225, %v2227
      %v2257 = vsel %vm510, %v2227, %v2229
      %v2258 = vsel %vm510, %v2229, %v2231
      %v2259 = vsel %vm510, %v2233, %v2235
      %v2260 = vsel %vm510, %v2235, %v2237
      %v2261 = vsel %vm510, %v2237, %v2239
      %v2262 = vsel %vm510, %v2241, %v2243
      %v2263 = vsel %vm510, %v2243, %v2245
      %v2264 = vsel %vm510, %v2245, %v2247
      %v2265 = vsel %vm510, %v2249, %v2251
      %v2266 = vsel %vm510, %v2251, %v2253
      %v2267 = vsel %vm510, %v2253, %v2255
      %v2284 = vmul.f32 %v2084, %v2256
      %v2285 = vmul.f32 %v2086, %v2257
      %v2286 = vmul.f32 %v2190, %v2258
      %v2287 = vmul.f32 %v2192, %v2231
      %v2288 = vmul.f32 %v2088, %v2259
      %v2289 = vmul.f32 %v2090, %v2260
      %v2290 = vmul.f32 %v2194, %v2261
      %v2291 = vmul.f32 %v2196, %v2239
      %v2292 = vmul.f32 %v2094, %v2262
      %v2293 = vmul.f32 %v2096, %v2263
      %v2294 = vmul.f32 %v2200, %v2264
      %v2295 = vmul.f32 %v2202, %v2247
      %v2296 = vmul.f32 %v2098, %v2265
      %v2297 = vmul.f32 %v2100, %v2266
      %v2298 = vmul.f32 %v2204, %v2267
      %v2299 = vmul.f32 %v2206, %v2255
      %2300 = vrot.lane.b32.xlu0 %v877, 71
      %v2301 = vpop.permute.xlu0 %2300
      %2302 = vrot.lane.b32.xlu0 %v881, 71
      %v2303 = vpop.permute.xlu0 %2302
      %2304 = vrot.lane.b32.xlu0 %v885, 71
      %v2305 = vpop.permute.xlu0 %2304
      %2306 = vrot.lane.b32.xlu0 %v889, 71
      %v2307 = vpop.permute.xlu0 %2306
      %vm2308 = vcmask 580608
      %v2309 = vsel %vm2308, %v2301, %v2303
      %v2310 = vsel %vm2308, %v2303, %v2305
      %v2311 = vsel %vm2308, %v2305, %v2307
      %v2316 = vmul.f32 %v2284, %v2309
      %v2317 = vmul.f32 %v2285, %v2310
      %v2318 = vmul.f32 %v2286, %v2311
      %v2319 = vmul.f32 %v2287, %v2307
      %v2320 = vmul.f32 %v2288, %v2309
      %v2321 = vmul.f32 %v2289, %v2310
      %v2322 = vmul.f32 %v2290, %v2311
      %v2323 = vmul.f32 %v2291, %v2307
      %v2324 = vmul.f32 %v2292, %v2309
      %v2325 = vmul.f32 %v2293, %v2310
      %v2326 = vmul.f32 %v2294, %v2311
      %v2327 = vmul.f32 %v2295, %v2307
      %v2328 = vmul.f32 %v2296, %v2309
      %v2329 = vmul.f32 %v2297, %v2310
      %v2330 = vmul.f32 %v2298, %v2311
      %v2331 = vmul.f32 %v2299, %v2307
      %v2332 = vpack.c.bf16 %v2320, %v2316
      %v2333 = vpack.c.bf16 %v2321, %v2317
      %v2334 = vpack.c.bf16 %v2322, %v2318
      %v2335 = vpack.c.bf16 %v2323, %v2319
      %v2336 = vpack.c.bf16 %v2328, %v2324
      %v2337 = vpack.c.bf16 %v2329, %v2325
      %v2338 = vpack.c.bf16 %v2330, %v2326
      %v2339 = vpack.c.bf16 %v2331, %v2327
      %2348 = vrot.lane.b32.xlu0 %v2332, 127
      %v2349 = vpop.permute.xlu0 %2348
      %2350 = vrot.lane.b32.xlu0 %v2333, 127
      %v2351 = vpop.permute.xlu0 %2350
      %2352 = vrot.lane.b32.xlu0 %v2334, 127
      %v2353 = vpop.permute.xlu0 %2352
      %2354 = vrot.lane.b32.xlu0 %v2335, 127
      %v2355 = vpop.permute.xlu0 %2354
      %2356 = vrot.lane.b32.xlu0 %v2336, 127
      %v2357 = vpop.permute.xlu0 %2356
      %2358 = vrot.lane.b32.xlu0 %v2337, 127
      %v2359 = vpop.permute.xlu0 %2358
      %2360 = vrot.lane.b32.xlu0 %v2338, 127
      %v2361 = vpop.permute.xlu0 %2360
      %2362 = vrot.lane.b32.xlu0 %v2339, 127
      %v2363 = vpop.permute.xlu0 %2362
      %v2364 = vsel %vm1008, %v2349, %v2351
      %v2365 = vsel %vm1008, %v2351, %v2353
      %v2366 = vsel %vm1008, %v2353, %v2355
      %v2367 = vsel %vm1008, %v2357, %v2359
      %v2368 = vsel %vm1008, %v2359, %v2361
      %v2369 = vsel %vm1008, %v2361, %v2363
      %2376 = vrot.lane.b32.xlu0 %v2332, 126
      %v2377 = vpop.permute.xlu0 %2376
      %2378 = vrot.lane.b32.xlu0 %v2333, 126
      %v2379 = vpop.permute.xlu0 %2378
      %2380 = vrot.lane.b32.xlu0 %v2334, 126
      %v2381 = vpop.permute.xlu0 %2380
      %2382 = vrot.lane.b32.xlu0 %v2335, 126
      %v2383 = vpop.permute.xlu0 %2382
      %2384 = vrot.lane.b32.xlu0 %v2336, 126
      %v2385 = vpop.permute.xlu0 %2384
      %2386 = vrot.lane.b32.xlu0 %v2337, 126
      %v2387 = vpop.permute.xlu0 %2386
      %2388 = vrot.lane.b32.xlu0 %v2338, 126
      %v2389 = vpop.permute.xlu0 %2388
      %2390 = vrot.lane.b32.xlu0 %v2339, 126
      %v2391 = vpop.permute.xlu0 %2390
      %v2392 = vsel %vm1039, %v2377, %v2379
      %v2393 = vsel %vm1039, %v2379, %v2381
      %v2394 = vsel %vm1039, %v2381, %v2383
      %v2395 = vsel %vm1039, %v2385, %v2387
      %v2396 = vsel %vm1039, %v2387, %v2389
      %v2397 = vsel %vm1039, %v2389, %v2391
      %2404 = vrot.lane.b32.xlu0 %v2332, 110
      %v2405 = vpop.permute.xlu0 %2404
      %2406 = vrot.lane.b32.xlu0 %v2333, 110
      %v2407 = vpop.permute.xlu0 %2406
      %2408 = vrot.lane.b32.xlu0 %v2334, 110
      %v2409 = vpop.permute.xlu0 %2408
      %2410 = vrot.lane.b32.xlu0 %v2335, 110
      %v2411 = vpop.permute.xlu0 %2410
      %2412 = vrot.lane.b32.xlu0 %v2336, 110
      %v2413 = vpop.permute.xlu0 %2412
      %2414 = vrot.lane.b32.xlu0 %v2337, 110
      %v2415 = vpop.permute.xlu0 %2414
      %2416 = vrot.lane.b32.xlu0 %v2338, 110
      %v2417 = vpop.permute.xlu0 %2416
      %2418 = vrot.lane.b32.xlu0 %v2339, 110
      %v2419 = vpop.permute.xlu0 %2418
      %v2420 = vsel %vm1070, %v2405, %v2407
      %v2421 = vsel %vm1070, %v2407, %v2409
      %v2422 = vsel %vm1070, %v2409, %v2411
      %v2423 = vsel %vm1070, %v2413, %v2415
      %v2424 = vsel %vm1070, %v2415, %v2417
      %v2425 = vsel %vm1070, %v2417, %v2419
      %2432 = vrot.lane.b32.xlu0 %v2332, 109
      %v2433 = vpop.permute.xlu0 %2432
      %2434 = vrot.lane.b32.xlu0 %v2333, 109
      %v2435 = vpop.permute.xlu0 %2434
      %2436 = vrot.lane.b32.xlu0 %v2334, 109
      %v2437 = vpop.permute.xlu0 %2436
      %2438 = vrot.lane.b32.xlu0 %v2335, 109
      %v2439 = vpop.permute.xlu0 %2438
      %2440 = vrot.lane.b32.xlu0 %v2336, 109
      %v2441 = vpop.permute.xlu0 %2440
      %2442 = vrot.lane.b32.xlu0 %v2337, 109
      %v2443 = vpop.permute.xlu0 %2442
      %2444 = vrot.lane.b32.xlu0 %v2338, 109
      %v2445 = vpop.permute.xlu0 %2444
      %2446 = vrot.lane.b32.xlu0 %v2339, 109
      %v2447 = vpop.permute.xlu0 %2446
      %v2448 = vsel %vm1101, %v2433, %v2435
      %v2449 = vsel %vm1101, %v2435, %v2437
      %v2450 = vsel %vm1101, %v2437, %v2439
      %v2451 = vsel %vm1101, %v2441, %v2443
      %v2452 = vsel %vm1101, %v2443, %v2445
      %v2453 = vsel %vm1101, %v2445, %v2447
      %2460 = vrot.lane.b32.xlu0 %v2332, 108
      %v2461 = vpop.permute.xlu0 %2460
      %2462 = vrot.lane.b32.xlu0 %v2333, 108
      %v2463 = vpop.permute.xlu0 %2462
      %2464 = vrot.lane.b32.xlu0 %v2334, 108
      %v2465 = vpop.permute.xlu0 %2464
      %2466 = vrot.lane.b32.xlu0 %v2335, 108
      %v2467 = vpop.permute.xlu0 %2466
      %2468 = vrot.lane.b32.xlu0 %v2336, 108
      %v2469 = vpop.permute.xlu0 %2468
      %2470 = vrot.lane.b32.xlu0 %v2337, 108
      %v2471 = vpop.permute.xlu0 %2470
      %2472 = vrot.lane.b32.xlu0 %v2338, 108
      %v2473 = vpop.permute.xlu0 %2472
      %2474 = vrot.lane.b32.xlu0 %v2339, 108
      %v2475 = vpop.permute.xlu0 %2474
      %v2476 = vsel %vm1132, %v2461, %v2463
      %v2477 = vsel %vm1132, %v2463, %v2465
      %v2478 = vsel %vm1132, %v2465, %v2467
      %v2479 = vsel %vm1132, %v2469, %v2471
      %v2480 = vsel %vm1132, %v2471, %v2473
      %v2481 = vsel %vm1132, %v2473, %v2475
      %2488 = vrot.lane.b32.xlu0 %v2332, 92
      %v2489 = vpop.permute.xlu0 %2488
      %2490 = vrot.lane.b32.xlu0 %v2333, 92
      %v2491 = vpop.permute.xlu0 %2490
      %2492 = vrot.lane.b32.xlu0 %v2334, 92
      %v2493 = vpop.permute.xlu0 %2492
      %2494 = vrot.lane.b32.xlu0 %v2335, 92
      %v2495 = vpop.permute.xlu0 %2494
      %2496 = vrot.lane.b32.xlu0 %v2336, 92
      %v2497 = vpop.permute.xlu0 %2496
      %2498 = vrot.lane.b32.xlu0 %v2337, 92
      %v2499 = vpop.permute.xlu0 %2498
      %2500 = vrot.lane.b32.xlu0 %v2338, 92
      %v2501 = vpop.permute.xlu0 %2500
      %2502 = vrot.lane.b32.xlu0 %v2339, 92
      %v2503 = vpop.permute.xlu0 %2502
      %v2504 = vsel %vm1163, %v2489, %v2491
      %v2505 = vsel %vm1163, %v2491, %v2493
      %v2506 = vsel %vm1163, %v2493, %v2495
      %v2507 = vsel %vm1163, %v2497, %v2499
      %v2508 = vsel %vm1163, %v2499, %v2501
      %v2509 = vsel %vm1163, %v2501, %v2503
      %2516 = vrot.lane.b32.xlu0 %v2332, 91
      %v2517 = vpop.permute.xlu0 %2516
      %2518 = vrot.lane.b32.xlu0 %v2333, 91
      %v2519 = vpop.permute.xlu0 %2518
      %2520 = vrot.lane.b32.xlu0 %v2334, 91
      %v2521 = vpop.permute.xlu0 %2520
      %2522 = vrot.lane.b32.xlu0 %v2335, 91
      %v2523 = vpop.permute.xlu0 %2522
      %2524 = vrot.lane.b32.xlu0 %v2336, 91
      %v2525 = vpop.permute.xlu0 %2524
      %2526 = vrot.lane.b32.xlu0 %v2337, 91
      %v2527 = vpop.permute.xlu0 %2526
      %2528 = vrot.lane.b32.xlu0 %v2338, 91
      %v2529 = vpop.permute.xlu0 %2528
      %2530 = vrot.lane.b32.xlu0 %v2339, 91
      %v2531 = vpop.permute.xlu0 %2530
      %v2532 = vsel %vm1194, %v2517, %v2519
      %v2533 = vsel %vm1194, %v2519, %v2521
      %v2534 = vsel %vm1194, %v2521, %v2523
      %v2535 = vsel %vm1194, %v2525, %v2527
      %v2536 = vsel %vm1194, %v2527, %v2529
      %v2537 = vsel %vm1194, %v2529, %v2531
      %2544 = vrot.lane.b32.xlu0 %v2332, 90
      %v2545 = vpop.permute.xlu0 %2544
      %2546 = vrot.lane.b32.xlu0 %v2333, 90
      %v2547 = vpop.permute.xlu0 %2546
      %2548 = vrot.lane.b32.xlu0 %v2334, 90
      %v2549 = vpop.permute.xlu0 %2548
      %2550 = vrot.lane.b32.xlu0 %v2335, 90
      %v2551 = vpop.permute.xlu0 %2550
      %2552 = vrot.lane.b32.xlu0 %v2336, 90
      %v2553 = vpop.permute.xlu0 %2552
      %2554 = vrot.lane.b32.xlu0 %v2337, 90
      %v2555 = vpop.permute.xlu0 %2554
      %2556 = vrot.lane.b32.xlu0 %v2338, 90
      %v2557 = vpop.permute.xlu0 %2556
      %2558 = vrot.lane.b32.xlu0 %v2339, 90
      %v2559 = vpop.permute.xlu0 %2558
      %v2560 = vsel %vm1225, %v2545, %v2547
      %v2561 = vsel %vm1225, %v2547, %v2549
      %v2562 = vsel %vm1225, %v2549, %v2551
      %v2563 = vsel %vm1225, %v2553, %v2555
      %v2564 = vsel %vm1225, %v2555, %v2557
      %v2565 = vsel %vm1225, %v2557, %v2559
      %v2572 = vld [vmem:[%s8] sm:$0xff]
      %v2573 = vld [vmem:[%s8 + $0x8] sm:$0xf]
      %v2576 = vunpack.c.l.b16 %v2572
      %v2577 = vunpack.c.h.b16 %v2572
      %v2578 = vunpack.c.l.b16 %v2573
      %v2579 = vpack.c.b16 %v2576, %v2576
      %v2580 = vpack.c.b16 %v2577, %v2577
      %v2581 = vpack.c.b16 %v2578, %v2578
      %v2585 = vsel %vm1302, %v2581, 0
      %2587 = vmatprep.subr.bf16.mxu0 %v2424
      %2588 = vmatpush1.bf16.msra.mxu0 %v2423
      %2589 = vmatprep.subr.bf16.mxu0 %v2421
      %2590 = vmatpush1.bf16.msra.mxu0 %v2420
      %2591 = vmatprep.subr.bf16.mxu0 %v2396
      %2592 = vmatpush1.bf16.msra.mxu0 %v2395
      %2593 = vmatprep.subr.bf16.mxu0 %v2393
      %2594 = vmatpush1.bf16.msra.mxu0 %v2392
      %2595 = vmatprep.subr.bf16.mxu0 %v2368
      %2596 = vmatpush1.bf16.msra.mxu0 %v2367
      %2597 = vmatprep.subr.bf16.mxu0 %v2365
      %2598 = vmatpush1.bf16.msra.mxu0 %v2364
      %2599 = vmatprep.subr.bf16.mxu0 %v2337
      %2600 = vmatpush1.bf16.msra.mxu0 %v2336
      %2601 = vmatprep.subr.bf16.mxu0 %v2333
      %2602 = vmatpush1.bf16.msra.mxu0 %v2332
      %2603 = vmatprep.subr.bf16.mxu0 %v2536
      %2604 = vmatpush2.bf16.msra.mxu0 %v2535
      %2605 = vmatprep.subr.bf16.mxu0 %v2533
      %2606 = vmatpush2.bf16.msra.mxu0 %v2532
      %2607 = vmatprep.subr.bf16.mxu0 %v2508
      %2608 = vmatpush2.bf16.msra.mxu0 %v2507
      %2609 = vmatprep.subr.bf16.mxu0 %v2505
      %2610 = vmatpush2.bf16.msra.mxu0 %v2504
      %2611 = vmatprep.subr.bf16.mxu0 %v2480
      %2612 = vmatpush2.bf16.msra.mxu0 %v2479
      %2613 = vmatprep.subr.bf16.mxu0 %v2477
      %2614 = vmatpush2.bf16.msra.mxu0 %v2476
      %2615 = vmatprep.subr.bf16.mxu0 %v2452
      %2616 = vmatpush2.bf16.msra.mxu0 %v2451
      %2617 = vmatprep.subr.bf16.mxu0 %v2449
      %2618 = vmatpush2.bf16.msra.mxu0 %v2448
      %2619 = vmatprep.mubr.bf16.mxu0 %v2580
      %2620 = vmatmul.mubr.bf16.gmra.mxu0 %v2579
      %v2621 = vpop.f32.mrf.mxu0
      %v2622 = vadd.f32 0.0, %v2621
      %v2623 = vpop.f32.mrf.mxu0
      %v2624 = vadd.f32 0.0, %v2623
      %v2625 = vpop.f32.mrf.mxu0
      %v2626 = vpop.f32.mrf.mxu0
      %2627 = vdwg.mxu0
      %2628 = vmatprep.subr.bf16.mxu0 0
      %2629 = vmatpush1.bf16.msra.mxu0 0
      %2630 = vmatprep.subr.bf16.mxu0 0
      %2631 = vmatpush1.bf16.msra.mxu0 0
      %2632 = vmatprep.subr.bf16.mxu0 0
      %2633 = vmatpush1.bf16.msra.mxu0 0
      %2634 = vmatprep.subr.bf16.mxu0 0
      %2635 = vmatpush1.bf16.msra.mxu0 0
      %2636 = vmatprep.subr.bf16.mxu0 0
      %2637 = vmatpush1.bf16.msra.mxu0 0
      %2638 = vmatprep.subr.bf16.mxu0 0
      %2639 = vmatpush1.bf16.msra.mxu0 0
      %2640 = vmatprep.subr.bf16.mxu0 %v2564
      %2641 = vmatpush1.bf16.msra.mxu0 %v2563
      %2642 = vmatprep.subr.bf16.mxu0 %v2561
      %2643 = vmatpush1.bf16.msra.mxu0 %v2560
      %2644 = vmatprep.subr.bf16.mxu0 0
      %2645 = vmatpush2.bf16.msra.mxu0 0
      %2646 = vmatprep.subr.bf16.mxu0 0
      %2647 = vmatpush2.bf16.msra.mxu0 0
      %2648 = vmatprep.subr.bf16.mxu0 0
      %2649 = vmatpush2.bf16.msra.mxu0 0
      %2650 = vmatprep.subr.bf16.mxu0 0
      %2651 = vmatpush2.bf16.msra.mxu0 0
      %2652 = vmatprep.subr.bf16.mxu0 0
      %2653 = vmatpush2.bf16.msra.mxu0 0
      %2654 = vmatprep.subr.bf16.mxu0 0
      %2655 = vmatpush2.bf16.msra.mxu0 0
      %2656 = vmatprep.subr.bf16.mxu0 0
      %2657 = vmatpush2.bf16.msra.mxu0 0
      %2658 = vmatprep.subr.bf16.mxu0 0
      %2659 = vmatpush2.bf16.msra.mxu0 0
      %2660 = vmatprep.mubr.bf16.mxu0 0
      %2661 = vmatmul.mubr.bf16.gmra.mxu0 %v2585
      %v2662 = vpop.f32.mrf.mxu0
      %v2663 = vadd.f32 %v2622, %v2662
      %v2664 = vpop.f32.mrf.mxu0
      %v2665 = vadd.f32 %v2624, %v2664
      %v2666 = vpop.f32.mrf.mxu0
      %v2667 = vpop.f32.mrf.mxu0
      %2668 = vdwg.mxu0
      %2669 = vmatprep.subr.bf16.mxu0 0
      %2670 = vmatpush1.bf16.msra.mxu0 %v2425
      %2671 = vmatprep.subr.bf16.mxu0 0
      %2672 = vmatpush1.bf16.msra.mxu0 %v2422
      %2673 = vmatprep.subr.bf16.mxu0 0
      %2674 = vmatpush1.bf16.msra.mxu0 %v2397
      %2675 = vmatprep.subr.bf16.mxu0 0
      %2676 = vmatpush1.bf16.msra.mxu0 %v2394
      %2677 = vmatprep.subr.bf16.mxu0 0
      %2678 = vmatpush1.bf16.msra.mxu0 %v2369
      %2679 = vmatprep.subr.bf16.mxu0 0
      %2680 = vmatpush1.bf16.msra.mxu0 %v2366
      %2681 = vmatprep.subr.bf16.mxu0 0
      %2682 = vmatpush1.bf16.msra.mxu0 %v2338
      %2683 = vmatprep.subr.bf16.mxu0 0
      %2684 = vmatpush1.bf16.msra.mxu0 %v2334
      %2685 = vmatprep.subr.bf16.mxu0 0
      %2686 = vmatpush2.bf16.msra.mxu0 %v2537
      %2687 = vmatprep.subr.bf16.mxu0 0
      %2688 = vmatpush2.bf16.msra.mxu0 %v2534
      %2689 = vmatprep.subr.bf16.mxu0 0
      %2690 = vmatpush2.bf16.msra.mxu0 %v2509
      %2691 = vmatprep.subr.bf16.mxu0 0
      %2692 = vmatpush2.bf16.msra.mxu0 %v2506
      %2693 = vmatprep.subr.bf16.mxu0 0
      %2694 = vmatpush2.bf16.msra.mxu0 %v2481
      %2695 = vmatprep.subr.bf16.mxu0 0
      %2696 = vmatpush2.bf16.msra.mxu0 %v2478
      %2697 = vmatprep.subr.bf16.mxu0 0
      %2698 = vmatpush2.bf16.msra.mxu0 %v2453
      %2699 = vmatprep.subr.bf16.mxu0 0
      %2700 = vmatpush2.bf16.msra.mxu0 %v2450
      %2701 = vmatprep.mubr.bf16.mxu0 %v2580
      %2702 = vmatmul.mubr.bf16.gmra.mxu0 %v2579
      %v2703 = vpop.f32.mrf.mxu0
      %v2704 = vadd.f32 0.0, %v2703
      %v2705 = vpop.f32.mrf.mxu0
      %v2706 = vpop.f32.mrf.mxu0
      %v2707 = vpop.f32.mrf.mxu0
      %2708 = vdwg.mxu0
      %2709 = vmatprep.subr.bf16.mxu0 0
      %2710 = vmatpush1.bf16.msra.mxu0 0
      %2711 = vmatprep.subr.bf16.mxu0 0
      %2712 = vmatpush1.bf16.msra.mxu0 0
      %2713 = vmatprep.subr.bf16.mxu0 0
      %2714 = vmatpush1.bf16.msra.mxu0 0
      %2715 = vmatprep.subr.bf16.mxu0 0
      %2716 = vmatpush1.bf16.msra.mxu0 0
      %2717 = vmatprep.subr.bf16.mxu0 0
      %2718 = vmatpush1.bf16.msra.mxu0 0
      %2719 = vmatprep.subr.bf16.mxu0 0
      %2720 = vmatpush1.bf16.msra.mxu0 0
      %2721 = vmatprep.subr.bf16.mxu0 0
      %2722 = vmatpush1.bf16.msra.mxu0 %v2565
      %2723 = vmatprep.subr.bf16.mxu0 0
      %2724 = vmatpush1.bf16.msra.mxu0 %v2562
      %2725 = vmatprep.subr.bf16.mxu0 0
      %2726 = vmatpush2.bf16.msra.mxu0 0
      %2727 = vmatprep.subr.bf16.mxu0 0
      %2728 = vmatpush2.bf16.msra.mxu0 0
      %2729 = vmatprep.subr.bf16.mxu0 0
      %2730 = vmatpush2.bf16.msra.mxu0 0
      %2731 = vmatprep.subr.bf16.mxu0 0
      %2732 = vmatpush2.bf16.msra.mxu0 0
      %2733 = vmatprep.subr.bf16.mxu0 0
      %2734 = vmatpush2.bf16.msra.mxu0 0
      %2735 = vmatprep.subr.bf16.mxu0 0
      %2736 = vmatpush2.bf16.msra.mxu0 0
      %2737 = vmatprep.subr.bf16.mxu0 0
      %2738 = vmatpush2.bf16.msra.mxu0 0
      %2739 = vmatprep.subr.bf16.mxu0 0
      %2740 = vmatpush2.bf16.msra.mxu0 0
      %2741 = vmatprep.mubr.bf16.mxu0 0
      %2742 = vmatmul.mubr.bf16.gmra.mxu0 %v2585
      %v2743 = vpop.f32.mrf.mxu0
      %v2744 = vadd.f32 %v2704, %v2743
      %v2745 = vpop.f32.mrf.mxu0
      %v2746 = vpop.f32.mrf.mxu0
      %v2747 = vpop.f32.mrf.mxu0
      %2748 = vdwg.mxu0
      %v2749 = vld [vmem:[%s340] sm:$0x7]
      %2751 = vrot.lane.b32.xlu0 %v2749, 76
      %v2752 = vpop.permute.xlu0 %2751
      %v2753 = vrot.slane %v2752, 7
      %vm2754 = vcmask 621568
      %v2755 = vsel %vm2754, %v2753, %v2752
      %v2757 = vsub.f32 %v346, %v2755
      %v2758 = vmul.f32 %v2757, 2.0
      %v2759 = vsub.f32 1.0, %v346
      %v2760 = vadd.f32 %v2759, 1e-16
      %v2761 = vlog2.pop %v2760
      %v2762 = vmul.f32 %v2761, 0.6931472
      %v2763 = vadd.f32 %v346, 1e-16
      %v2764 = vlog2.pop %v2763
      %v2765 = vmul.f32 %v2764, 0.6931472
      %v2766 = vsub.f32 %v2762, %v2765
      %v2770 = vcombine.low %v2663, %v2665
      %v2772 = vunpack.c.l.s4 1966171168
      %v2773 = vunpack.c.0.s8 %v2772
      %v2774 = vlaneseq
      %v2775 = vshrl.u32 %v2774, 7
      %v2776 = vsub.s32 %v2773, %v2775
      %v2777 = vrot.slane %v2770, %v2776
      %v2779 = vunpack.c.l.s4 1966171168
      %v2780 = vunpack.c.0.s8 %v2779
      %v2781 = vlaneseq
      %v2782 = vshrl.u32 %v2781, 7
      %v2783 = vsub.s32 %v2780, %v2782
      %v2784 = vrot.slane %v2744, %v2783
      %v2785 = vcombine.low %v2777, %v2784
      %v2787 = vunpack.c.l.s4 1966171168
      %v2788 = vunpack.c.0.s8 %v2787
      %v2789 = vlaneseq
      %v2790 = vshrl.u32 %v2789, 7
      %v2791 = vsub.s32 %v2788, %v2790
      %v2792 = vrot.slane %v2785, %v2791
      %2793 = vrot.lane.b32.xlu0 %v2792, 76
      %v2794 = vpop.permute.xlu0 %2793
      %v2795 = vrot.slane %v2794, 7
      %v2796 = vsel %vm2754, %v2795, %v2794
      %v2798 = vsub.f32 %v2758, %v2796
      %v2799 = vmul.f32 %v2766, 0.3
      %v2800 = vadd.f32 %v2798, %v2799
      %2802 = vrot.lane.b32.xlu0 %v2800, 52
      %v2803 = vpop.permute.xlu0 %2802
      %v2804 = vrot.slane %v2803, 1
      %vm2805 = vcmask 424960
      %v2806 = vsel %vm2805, %v2803, %v2804
      %v2808 = vlaneseq
      %vm2809 = vcmp.ge.s32.totalorder %v2808, 0
      %vm2810 = vcmp.lt.s32.totalorder %v2808, 384
      %vm2811 = vmand %vm2809, %vm2810
      %2812 = vst.msk [vmem:[%s344] sm:$0x7] %vm2811, %v2806
      %p2813 = scmp.lt.s32.totalorder %s20, 1
      %s2814 = scalar_select %p2813, %s20, 1
      %s2815 = smul.addr %s2814, 3
      %s2816 = scalar_lea.vmem %s9, %s2815
      // Predicated region
      $region57: #{_de_dy_forward.1} parent=55 // pred_check
        %p2817 = pneg %p237
      $region58: #{_de_dy_forward.1} parent=55 // pred_check_branch
        %2819 = sbr.rel (%p2817) target = $region60
      $region59: #{_de_dy_forward.1} parent=55 // pred_region
        _
      $region60: #{_de_dy_forward.1} parent=55 // pred_fallthru
        _
    $region56: #{_de_dy_forward.1} parent=5 // pred_fallthru
      _
    %p2820 = scmp.le.s32.totalorder 2, %s15
    // Predicated region
    $region61: #{_de_dy_forward.1} parent=5 // pred_check
      %p2821 = pneg %p2820
    $region62: #{_de_dy_forward.1} parent=5 // pred_check_branch
      %2823 = sbr.rel (%p2821) target = $region64
    $region63: #{_de_dy_forward.1} parent=5 // pred_region
      %s2824 = ssub.s32 %s15, 2
      // Predicated region
      $region65: #{_de_dy_forward.1} parent=63 // pred_check
        %p2825 = pneg %p243
      $region66: #{_de_dy_forward.1} parent=63 // pred_check_branch
        %2827 = sbr.rel (%p2825) target = $region68
      $region67: #{_de_dy_forward.1} parent=63 // pred_region
        %p2828 = scmp.lt.s32.totalorder %s21, 1
        %s2829 = scalar_select %p2828, %s21, 1
        %s2830 = smul.addr %s2829, 3
        %s2831 = scalar_lea.vmem %s9, %s2830
      $region68: #{_de_dy_forward.1} parent=63 // pred_fallthru
        _
    $region64: #{_de_dy_forward.1} parent=5 // pred_fallthru
      _
  $region6: #{_de_dy_forward.1} parent=0 // loop_footer
    %s19 = sadd.s32 1, %s15
  $region7: #{_de_dy_forward.1} parent=0 // loop_footer_branch
    %14 = sbr.rel target = $region3
  $region8: #{_de_dy_forward.1} parent=0 // loop_exit
    _

</llo_original>
